<compile_context>
chip_gen: v5e
topology: v5e:2x2
jax: 0.10.0
libtpu: 0.0.40
codegen_flags: <defaults>
</compile_context>

<pallas_src>
import numpy as np
import jax
import jax.numpy as jnp
from jax import lax
from jax.experimental import pallas as pl
from jax.experimental.pallas import tpu as pltpu


# ----------------------------------------------------------------------------
# IMDCT synthesis basis (mirrors vocos.spectral_ops.IMDCT, per frame).
# The per-frame IMDCT is linear in the N coefficients -> an (N, 2N) real
# matrix; the cosine window is folded into it.
# ----------------------------------------------------------------------------
def build_imdct_basis(frame_len: int) -> np.ndarray:
    N = frame_len // 2
    n0 = (N + 1) / 2.0
    n = np.arange(2 * N)
    pre_twiddle = np.exp(1j * np.pi * n0 * n / N)            # (2N,)
    post_twiddle = np.exp(1j * np.pi * (n + n0) / (2 * N))   # (2N,)
    window = np.sin(np.pi / frame_len * (n + 0.5))           # scipy.signal.cosine

    X = np.eye(N, dtype=np.float64)
    Y = np.zeros((N, 2 * N), dtype=np.float64)
    Y[:, :N] = X
    Y[:, N:] = -X[:, ::-1]                                   # -conj(flip(X)), X real

    y = np.fft.ifft(Y * pre_twiddle[None, :], axis=-1)
    res = np.real(y * post_twiddle[None, :]) * np.sqrt(N) * np.sqrt(2.0)
    basis = res * window[None, :]                            # (N, 2N)
    return basis.astype(np.float32)


def _symexp_clip(y):
    # symexp(y) = sign(y) * (exp(|y|) - 1): one exp (EUP) + one select.
    # NOTE(v5e): if a bundle dump shows this VALU-bound, swap the negate+select
    # for a sign-bit OR via pltpu.bitcast; on v6e/v7x it hides under the MXU.
    e = jnp.exp(jnp.abs(y)) - 1.0
    y = jnp.where(y >= 0.0, e, -e)
    return jnp.clip(y, -100.0, 100.0)


def _round_up(v: int, m: int) -> int:
    return ((v + m - 1) // m) * m


# ----------------------------------------------------------------------------
# Pallas kernel: (tm, H) row tile -> (tm, N) overlap-added audio block, plus a
# (1, N) tail frame emitted in the last grid step.
# ----------------------------------------------------------------------------
def _make_kernel(tm: int, N: int, n_tiles: int, r_last: int, matmul_dtype):
    def kernel(x_ref, w_ref, b_ref, m1_ref, m2_ref, o_ref, tail_ref, carry_ref):
        i = pl.program_id(1)  # serial tile index along the frame axis

        @pl.when(i == 0)
        def _():
            carry_ref[...] = jnp.zeros_like(carry_ref)

        # Linear: matmul_dtype operands on the MXU, f32 accumulate; bias in f32.
        xm = x_ref[...].astype(matmul_dtype)
        y = jnp.dot(xm, w_ref[...], preferred_element_type=jnp.float32)
        y = y + b_ref[...]
        y = _symexp_clip(y)                                    # f32, (tm, N)

        # One-row shift: y_prev[r] = y[r-1]; row 0 <- carry from previous tile.
        # pltpu.roll runs on the XLU (idle slot); the row-0 patch is one select.
        y_prev = pltpu.roll(y, shift=1, axis=0)
        row0 = lax.broadcasted_iota(jnp.int32, (tm, 1), 0) == 0
        y_prev = jnp.where(row0, carry_ref[...], y_prev)
        carry_ref[...] = y[tm - 1:tm, :]

        # Overlap-add as two accumulating matmuls; cast AFTER the clip so the
        # +/-100 bound survives the bf16 cast.
        y_md = y.astype(matmul_dtype)
        audio = jnp.dot(y_md, m1_ref[...], preferred_element_type=jnp.float32)
        audio = audio + jnp.dot(y_prev.astype(matmul_dtype), m2_ref[...],
                                preferred_element_type=jnp.float32)
        o_ref[...] = audio

        # Last step: tail frame (fold row L) = y[L-1] @ basis[:, N:]; r_last is
        # the static in-tile row index of the last valid frame.
        @pl.when(i == n_tiles - 1)
        def _():
            tail_ref[...] = jnp.dot(y_md[r_last:r_last + 1, :], m2_ref[...],
                                    preferred_element_type=jnp.float32)

    return kernel


def imdct_symexp_head(x, weight, bias, basis, frame_len, padding="same",
                      clip_audio=False, row_tile=512,
                      matmul_dtype=jnp.bfloat16):
    """x: (B, L, H). weight: (H, N) (transposed nn.Linear weight), bias: (N,),
    basis: (N, 2N) from build_imdct_basis.  Pass matmul_dtype=jnp.float32 for a
    bit-near-torch path."""
    B, L, H = x.shape
    N = frame_len // 2
    assert weight.shape == (H, N) and bias.shape == (N,)
    assert basis.shape == (N, 2 * N)

    if padding == "center":
        pad = frame_len // 2
    elif padding == "same":
        pad = frame_len // 4
    else:
        raise ValueError("Padding must be 'center' or 'same'.")

    # Row tile: multiple of 16 (bf16 sublane packing), clamped for short L.
    tm = max(16, (min(int(row_tile), _round_up(L, 16)) // 16) * 16)
    n_tiles = pl.cdiv(L, tm)
    L_pad = n_tiles * tm
    r_last = (L - 1) - (n_tiles - 1) * tm        # static: row of y[L-1] in last tile

    w = jnp.asarray(weight).astype(matmul_dtype)
    b2d = jnp.asarray(bias).reshape(1, N).astype(jnp.float32)
    m1 = jnp.asarray(basis[:, :N]).astype(matmul_dtype)      # first-half basis
    m2 = jnp.asarray(basis[:, N:]).astype(matmul_dtype)      # second-half basis

    x_bytes = np.dtype(x.dtype).itemsize
    md_bytes = np.dtype(matmul_dtype).itemsize

    # Explicit scoped-VMEM budget (v5e default is only 16 MiB).
    vmem_est = (2 * tm * H * x_bytes                     # x tile, double buffered
                + 2 * tm * N * 4 + 2 * N * 4             # audio + tail out tiles
                + (H * N + 2 * N * N) * md_bytes + N * 4  # resident constants
                + N * 4                                   # carry
                + 6 * tm * max(H, N) * 4)                 # register/intermediate headroom
    vmem_limit = int(min(48 << 20, max(32 << 20, 2 * vmem_est)))

    cost = pl.CostEstimate(
        flops=2 * B * L_pad * N * (H + 2 * N),
        transcendentals=B * L_pad * N,
        bytes_accessed=(B * L * H * x_bytes
                        + (H * N + 2 * N * N) * md_bytes + N * 4
                        + B * (L_pad + 1) * N * 4),
    )

    kernel = _make_kernel(tm, N, n_tiles, r_last, matmul_dtype)
    out_shape = (jax.ShapeDtypeStruct((B, L_pad, N), jnp.float32),
                 jax.ShapeDtypeStruct((B, 1, N), jnp.float32))

    def build(single_buffer_consts: bool):
        # Constant operands: index_map never changes -> no per-step DMA; single
        # buffering additionally halves their resident VMEM footprint.
        ckw = dict(pipeline_mode=pl.Buffered(1)) if single_buffer_consts else {}
        grid_spec = pltpu.PrefetchScalarGridSpec(
            num_scalar_prefetch=0,
            grid=(B, n_tiles),
            in_specs=[
                pl.BlockSpec((None, tm, H), lambda b, i: (b, i, 0)),
                pl.BlockSpec((H, N), lambda b, i: (0, 0), **ckw),
                pl.BlockSpec((1, N), lambda b, i: (0, 0), **ckw),
                pl.BlockSpec((N, N), lambda b, i: (0, 0), **ckw),
                pl.BlockSpec((N, N), lambda b, i: (0, 0), **ckw),
            ],
            out_specs=[
                pl.BlockSpec((None, tm, N), lambda b, i: (b, i, 0)),
                pl.BlockSpec((None, 1, N), lambda b, i: (b, 0, 0)),
            ],
            scratch_shapes=[pltpu.VMEM((1, N), jnp.float32)],   # overlap carry
        )
        return pl.pallas_call(
            kernel,
            out_shape=out_shape,
            grid_spec=grid_spec,
            compiler_params=pltpu.CompilerParams(
                dimension_semantics=("parallel", "arbitrary"),
                vmem_limit_bytes=vmem_limit),
            cost_estimate=cost,
        )

    try:
        audio_main, tail = jax.block_until_ready(build(True)(x, w, b2d, m1, m2))
    except Exception:
        # Older Pallas builds may reject pl.Buffered(1); default double
        # buffering is functionally identical (just uses more VMEM).
        audio_main, tail = build(False)(x, w, b2d, m1, m2)

    # Epilogue: single fused slice+concat producing the trimmed waveform.
    # fold output row j = y[j]@B1 + y[j-1]@B2 for j<L, row L = tail.
    main_flat = audio_main.reshape(B, L_pad * N)
    left = main_flat[:, pad:L * N]
    if pad < N:
        audio = jnp.concatenate([left, tail.reshape(B, N)[:, :N - pad]], axis=1)
    else:
        audio = left

    if clip_audio:
        # NOTE: the torch code clips the pre-head input here (looks like a
        # bug); we clip the audio. Default is False so semantics are unchanged.
        audio = jnp.clip(audio, -1.0, 1.0)
    return audio


# ----------------------------------------------------------------------------
# Pure-JAX reference (mirrors the kernel's matmul dtype so the comparison
# validates tiling / fusion / overlap-add precisely).
# ----------------------------------------------------------------------------
def reference(x, weight, bias, basis, frame_len, padding="same",
              matmul_dtype=jnp.bfloat16):
    B, L, H = x.shape
    N = frame_len // 2
    y = jnp.dot(x.astype(matmul_dtype).reshape(B * L, H),
                weight.astype(matmul_dtype),
                preferred_element_type=jnp.float32).reshape(B, L, N)
    y = y + bias[None, None, :].astype(jnp.float32)
    y = _symexp_clip(y)
    frames = jnp.einsum("bln,nt->blt", y.astype(matmul_dtype),
                        basis.astype(matmul_dtype),
                        preferred_element_type=jnp.float32)
    out_len = (L + 1) * N
    audio = jnp.zeros((B, out_len), dtype=jnp.float32)
    audio = audio.at[:, :L * N].add(frames[:, :, :N].reshape(B, L * N))
    audio = audio.at[:, N:].add(frames[:, :, N:].reshape(B, L * N))
    pad = frame_len // 4 if padding == "same" else frame_len // 2
    return audio[:, pad:-pad]


if __name__ == "__main__":
    mdct_frame_len = 16
    N = mdct_frame_len // 2  # out_dim = 8
    basis = jnp.asarray(build_imdct_basis(mdct_frame_len))

    configs = [
        # multi-tile + partial last block + tail frame + carry across tiles
        dict(B=2, L=40, H=32, row_tile=16, padding="same", x_dtype=jnp.float32),
        # single big tile, B=1, bf16 producer-side activations, center padding
        dict(B=1, L=64, H=32, row_tile=256, padding="center", x_dtype=jnp.bfloat16),
    ]

    key = jax.random.PRNGKey(0)
    for cfg in configs:
        B, L, H = cfg["B"], cfg["L"], cfg["H"]
        key, kx, kw, kb = jax.random.split(key, 4)

        x = jax.random.normal(kx, (B, L, H), dtype=jnp.float32).astype(cfg["x_dtype"])
        bound = 1.0 / np.sqrt(H)
        weight = jax.random.uniform(kw, (H, N), minval=-bound, maxval=bound,
                                    dtype=jnp.float32)
        bias = jax.random.uniform(kb, (N,), minval=-bound, maxval=bound,
                                  dtype=jnp.float32)

        out = imdct_symexp_head(x, weight, bias, basis, mdct_frame_len,
                                padding=cfg["padding"], row_tile=cfg["row_tile"])
        out = jax.block_until_ready(out)

        ref = reference(x, weight, bias, basis, mdct_frame_len,
                        padding=cfg["padding"])
        np.testing.assert_allclose(np.asarray(out), np.asarray(ref),
                                   rtol=5e-3, atol=5e-3)

    print("KERNEL_OK")
</pallas_src>

<mosaic_0001>
module attributes {stable_mosaic.version = 11 : i64} {
  func.func @kernel(%arg0: i32, %arg1: i32, %arg2: memref<1x16x32xf32, #tpu.memory_space<vmem>>, %arg3: memref<32x8xbf16, #tpu.memory_space<vmem>>, %arg4: memref<1x8xf32, #tpu.memory_space<vmem>>, %arg5: memref<8x8xbf16, #tpu.memory_space<vmem>>, %arg6: memref<8x8xbf16, #tpu.memory_space<vmem>>, %arg7: memref<1x16x8xf32, #tpu.memory_space<vmem>>, %arg8: memref<1x1x8xf32, #tpu.memory_space<vmem>>, %arg9: memref<1x8xf32, #tpu.memory_space<vmem>>) attributes {dimension_semantics = [#tpu.dimension_semantics<parallel>, #tpu.dimension_semantics<arbitrary>], iteration_bounds = array<i64: 2, 3>, scalar_prefetch = 0 : i64, scratch_operands = 1 : i64, tpu.core_type = #tpu.core_type<tc>, window_params = [{transform_indices = @transform_0, window_bounds = array<i64: 1, 16, 32>}, {pipeline_mode = #tpu.pipeline_mode<synchronous>, transform_indices = @transform_1, window_bounds = array<i64: 32, 8>}, {pipeline_mode = #tpu.pipeline_mode<synchronous>, transform_indices = @transform_2, window_bounds = array<i64: 1, 8>}, {pipeline_mode = #tpu.pipeline_mode<synchronous>, transform_indices = @transform_3, window_bounds = array<i64: 8, 8>}, {pipeline_mode = #tpu.pipeline_mode<synchronous>, transform_indices = @transform_4, window_bounds = array<i64: 8, 8>}, {transform_indices = @transform_5, window_bounds = array<i64: 1, 16, 8>}, {transform_indices = @transform_6, window_bounds = array<i64: 1, 1, 8>}]} {
    %c0_i32 = arith.constant 0 : i32
    %0 = arith.cmpi eq, %arg1, %c0_i32 : i32
    %1 = arith.extui %0 : i1 to i32
    %c0_i32_0 = arith.constant 0 : i32
    %2 = arith.cmpi ne, %1, %c0_i32_0 : i32
    scf.if %2 {
      %cst_27 = arith.constant 0.000000e+00 : f32
      %49 = vector.broadcast %cst_27 : f32 to vector<1x8xf32>
      %c0_28 = arith.constant 0 : index
      %c0_29 = arith.constant 0 : index
      %50 = vector.load %arg9[%c0_28, %c0_29] : memref<1x8xf32, #tpu.memory_space<vmem>>, vector<1x8xf32>
      tpu.vector_store %arg9[%c0_28, %c0_29], %49 {strides = array<i32>} : memref<1x8xf32, #tpu.memory_space<vmem>>, vector<1x8xf32>,
    } else {
    }
    %c0 = arith.constant 0 : index
    %c0_1 = arith.constant 0 : index
    %c0_2 = arith.constant 0 : index
    %3 = vector.load %arg2[%c0, %c0_1, %c0_2] : memref<1x16x32xf32, #tpu.memory_space<vmem>>, vector<1x16x32xf32>
    %4 = vector.shape_cast %3 : vector<1x16x32xf32> to vector<16x32xf32>
    %5 = arith.truncf %4 : vector<16x32xf32> to vector<16x32xbf16>
    %c0_3 = arith.constant 0 : index
    %c0_4 = arith.constant 0 : index
    %6 = vector.load %arg3[%c0_3, %c0_4] : memref<32x8xbf16, #tpu.memory_space<vmem>>, vector<32x8xbf16>
    %cst = arith.constant dense<0.000000e+00> : vector<16x8xf32>
    %7 = tpu.matmul %5, %6, %cst {dimension_numbers = #tpu.dot_dimension_numbers<[1], [0], [0], [1], [0, 0, 1, 1], [], []>} : vector<16x32xbf16>, vector<32x8xbf16>, vector<16x8xf32> -> vector<16x8xf32>
    %c0_5 = arith.constant 0 : index
    %c0_6 = arith.constant 0 : index
    %8 = vector.load %arg4[%c0_5, %c0_6] : memref<1x8xf32, #tpu.memory_space<vmem>>, vector<1x8xf32>
    %9 = vector.broadcast %8 : vector<1x8xf32> to vector<16x8xf32>
    %10 = arith.addf %7, %9 : vector<16x8xf32>
    %11 = math.absf %10 : vector<16x8xf32>
    %12 = math.exp %11 : vector<16x8xf32>
    %cst_7 = arith.constant 1.000000e+00 : f32
    %13 = vector.broadcast %cst_7 : f32 to vector<16x8xf32>
    %14 = arith.subf %12, %13 : vector<16x8xf32>
    %cst_8 = arith.constant 0.000000e+00 : f32
    %15 = vector.broadcast %cst_8 : f32 to vector<16x8xf32>
    %16 = arith.cmpf oge, %10, %15 : vector<16x8xf32>
    %cst_9 = arith.constant 0.000000e+00 : f32
    %17 = vector.broadcast %cst_9 : f32 to vector<16x8xf32>
    %18 = arith.subf %17, %14 : vector<16x8xf32>
    %19 = arith.select %16, %14, %18 : vector<16x8xi1>, vector<16x8xf32>
    %cst_10 = arith.constant -1.000000e+02 : f32
    %cst_11 = arith.constant 1.000000e+02 : f32
    %20 = vector.broadcast %cst_10 : f32 to vector<16x8xf32>
    %21 = arith.maximumf %20, %19 : vector<16x8xf32>
    %22 = vector.broadcast %cst_11 : f32 to vector<16x8xf32>
    %23 = arith.minimumf %22, %21 : vector<16x8xf32>
    %c1_i32 = arith.constant 1 : i32
    %24 = tpu.dynamic_rotate %23 by %c1_i32 dim 0 : vector<16x8xf32>, i32 -> vector<16x8xf32>
    %25 = tpu.iota {dimensions = array<i32: 0>} : vector<16x1xi32>
    %c0_i32_12 = arith.constant 0 : i32
    %26 = vector.broadcast %c0_i32_12 : i32 to vector<16x1xi32>
    %27 = arith.cmpi eq, %25, %26 : vector<16x1xi32>
    %c0_13 = arith.constant 0 : index
    %c0_14 = arith.constant 0 : index
    %28 = vector.load %arg9[%c0_13, %c0_14] : memref<1x8xf32, #tpu.memory_space<vmem>>, vector<1x8xf32>
    %29 = vector.shape_cast %27 : vector<16x1xi1> to vector<16x1xi1>
    %30 = vector.broadcast %29 : vector<16x1xi1> to vector<16x8xi1>
    %31 = vector.shape_cast %28 : vector<1x8xf32> to vector<1x8xf32>
    %32 = vector.broadcast %31 : vector<1x8xf32> to vector<16x8xf32>
    %33 = arith.select %30, %32, %24 : vector<16x8xi1>, vector<16x8xf32>
    %34 = vector.extract_strided_slice %23 {offsets = [15, 0], sizes = [1, 8], strides = [1, 1]} : vector<16x8xf32> to vector<1x8xf32>
    %c0_15 = arith.constant 0 : index
    %c0_16 = arith.constant 0 : index
    %35 = vector.load %arg9[%c0_15, %c0_16] : memref<1x8xf32, #tpu.memory_space<vmem>>, vector<1x8xf32>
    tpu.vector_store %arg9[%c0_15, %c0_16], %34 {strides = array<i32>} : memref<1x8xf32, #tpu.memory_space<vmem>>, vector<1x8xf32>,
    %36 = arith.truncf %23 : vector<16x8xf32> to vector<16x8xbf16>
    %c0_17 = arith.constant 0 : index
    %c0_18 = arith.constant 0 : index
    %37 = vector.load %arg5[%c0_17, %c0_18] : memref<8x8xbf16, #tpu.memory_space<vmem>>, vector<8x8xbf16>
    %cst_19 = arith.constant dense<0.000000e+00> : vector<16x8xf32>
    %38 = tpu.matmul %36, %37, %cst_19 {dimension_numbers = #tpu.dot_dimension_numbers<[1], [0], [0], [1], [0, 0, 1, 1], [], []>} : vector<16x8xbf16>, vector<8x8xbf16>, vector<16x8xf32> -> vector<16x8xf32>
    %39 = arith.truncf %33 : vector<16x8xf32> to vector<16x8xbf16>
    %c0_20 = arith.constant 0 : index
    %c0_21 = arith.constant 0 : index
    %40 = vector.load %arg6[%c0_20, %c0_21] : memref<8x8xbf16, #tpu.memory_space<vmem>>, vector<8x8xbf16>
    %cst_22 = arith.constant dense<0.000000e+00> : vector<16x8xf32>
    %41 = tpu.matmul %39, %40, %cst_22 {dimension_numbers = #tpu.dot_dimension_numbers<[1], [0], [0], [1], [0, 0, 1, 1], [], []>} : vector<16x8xbf16>, vector<8x8xbf16>, vector<16x8xf32> -> vector<16x8xf32>
    %42 = arith.addf %38, %41 : vector<16x8xf32>
    %c0_23 = arith.constant 0 : index
    %c0_24 = arith.constant 0 : index
    %c0_25 = arith.constant 0 : index
    %43 = vector.load %arg7[%c0_23, %c0_24, %c0_25] : memref<1x16x8xf32, #tpu.memory_space<vmem>>, vector<1x16x8xf32>
    %44 = vector.shape_cast %43 : vector<1x16x8xf32> to vector<16x8xf32>
    %45 = vector.shape_cast %42 : vector<16x8xf32> to vector<1x16x8xf32>
    tpu.vector_store %arg7[%c0_23, %c0_24, %c0_25], %45 {strides = array<i32>} : memref<1x16x8xf32, #tpu.memory_space<vmem>>, vector<1x16x8xf32>,
    %c2_i32 = arith.constant 2 : i32
    %46 = arith.cmpi eq, %arg1, %c2_i32 : i32
    %47 = arith.extui %46 : i1 to i32
    %c0_i32_26 = arith.constant 0 : i32
    %48 = arith.cmpi ne, %47, %c0_i32_26 : i32
    scf.if %48 {
      %49 = vector.extract_strided_slice %36 {offsets = [7, 0], sizes = [1, 8], strides = [1, 1]} : vector<16x8xbf16> to vector<1x8xbf16>
      %c0_27 = arith.constant 0 : index
      %c0_28 = arith.constant 0 : index
      %50 = vector.load %arg6[%c0_27, %c0_28] : memref<8x8xbf16, #tpu.memory_space<vmem>>, vector<8x8xbf16>
      %cst_29 = arith.constant dense<0.000000e+00> : vector<1x8xf32>
      %51 = tpu.matmul %49, %50, %cst_29 {dimension_numbers = #tpu.dot_dimension_numbers<[1], [0], [0], [1], [0, 0, 1, 1], [], []>} : vector<1x8xbf16>, vector<8x8xbf16>, vector<1x8xf32> -> vector<1x8xf32>
      %c0_30 = arith.constant 0 : index
      %c0_31 = arith.constant 0 : index
      %c0_32 = arith.constant 0 : index
      %52 = vector.load %arg8[%c0_30, %c0_31, %c0_32] : memref<1x1x8xf32, #tpu.memory_space<vmem>>, vector<1x1x8xf32>
      %53 = vector.shape_cast %52 : vector<1x1x8xf32> to vector<1x8xf32>
      %54 = vector.shape_cast %51 : vector<1x8xf32> to vector<1x1x8xf32>
      tpu.vector_store %arg8[%c0_30, %c0_31, %c0_32], %54 {strides = array<i32>} : memref<1x1x8xf32, #tpu.memory_space<vmem>>, vector<1x1x8xf32>,
    } else {
    }
    return
  }
  func.func @transform_0(%arg0: i32, %arg1: i32) -> (i32, i32, i32) {
    %c0_i32 = arith.constant 0 : i32
    %c0_i32_0 = arith.constant 0 : i32
    return %arg0, %arg1, %c0_i32 : i32, i32, i32
  }
  func.func @transform_1(%arg0: i32, %arg1: i32) -> (i32, i32) {
    %c0_i32 = arith.constant 0 : i32
    %c0_i32_0 = arith.constant 0 : i32
    %c0_i32_1 = arith.constant 0 : i32
    return %c0_i32, %c0_i32_0 : i32, i32
  }
  func.func @transform_2(%arg0: i32, %arg1: i32) -> (i32, i32) {
    %c0_i32 = arith.constant 0 : i32
    %c0_i32_0 = arith.constant 0 : i32
    %c0_i32_1 = arith.constant 0 : i32
    return %c0_i32, %c0_i32_0 : i32, i32
  }
  func.func @transform_3(%arg0: i32, %arg1: i32) -> (i32, i32) {
    %c0_i32 = arith.constant 0 : i32
    %c0_i32_0 = arith.constant 0 : i32
    %c0_i32_1 = arith.constant 0 : i32
    return %c0_i32, %c0_i32_0 : i32, i32
  }
  func.func @transform_4(%arg0: i32, %arg1: i32) -> (i32, i32) {
    %c0_i32 = arith.constant 0 : i32
    %c0_i32_0 = arith.constant 0 : i32
    %c0_i32_1 = arith.constant 0 : i32
    return %c0_i32, %c0_i32_0 : i32, i32
  }
  func.func @transform_5(%arg0: i32, %arg1: i32) -> (i32, i32, i32) {
    %c0_i32 = arith.constant 0 : i32
    %c0_i32_0 = arith.constant 0 : i32
    return %arg0, %arg1, %c0_i32 : i32, i32, i32
  }
  func.func @transform_6(%arg0: i32, %arg1: i32) -> (i32, i32, i32) {
    %c0_i32 = arith.constant 0 : i32
    %c0_i32_0 = arith.constant 0 : i32
    %c0_i32_1 = arith.constant 0 : i32
    return %arg0, %c0_i32, %c0_i32_0 : i32, i32, i32
  }
}

module attributes {stable_mosaic.version = 11 : i64} {
  func.func @kernel(%arg0: i32, %arg1: i32, %arg2: memref<1x16x32xf32, #tpu.memory_space<vmem>>, %arg3: memref<32x8xbf16, #tpu.memory_space<vmem>>, %arg4: memref<1x8xf32, #tpu.memory_space<vmem>>, %arg5: memref<8x8xbf16, #tpu.memory_space<vmem>>, %arg6: memref<8x8xbf16, #tpu.memory_space<vmem>>, %arg7: memref<1x16x8xf32, #tpu.memory_space<vmem>>, %arg8: memref<1x1x8xf32, #tpu.memory_space<vmem>>, %arg9: memref<1x8xf32, #tpu.memory_space<vmem>>) attributes {dimension_semantics = [#tpu.dimension_semantics<parallel>, #tpu.dimension_semantics<arbitrary>], iteration_bounds = array<i64: 2, 3>, scalar_prefetch = 0 : i64, scratch_operands = 1 : i64, tpu.core_type = #tpu.core_type<tc>, window_params = [{transform_indices = @transform_0, window_bounds = array<i64: 1, 16, 32>}, {pipeline_mode = #tpu.pipeline_mode<synchronous>, transform_indices = @transform_1, window_bounds = array<i64: 32, 8>}, {pipeline_mode = #tpu.pipeline_mode<synchronous>, transform_indices = @transform_2, window_bounds = array<i64: 1, 8>}, {pipeline_mode = #tpu.pipeline_mode<synchronous>, transform_indices = @transform_3, window_bounds = array<i64: 8, 8>}, {pipeline_mode = #tpu.pipeline_mode<synchronous>, transform_indices = @transform_4, window_bounds = array<i64: 8, 8>}, {transform_indices = @transform_5, window_bounds = array<i64: 1, 16, 8>}, {transform_indices = @transform_6, window_bounds = array<i64: 1, 1, 8>}]} {
    %c0_i32 = arith.constant 0 : i32
    %0 = arith.cmpi eq, %arg1, %c0_i32 : i32
    %1 = arith.extui %0 : i1 to i32
    %c0_i32_0 = arith.constant 0 : i32
    %2 = arith.cmpi ne, %1, %c0_i32_0 : i32
    scf.if %2 {
      %cst_27 = arith.constant 0.000000e+00 : f32
      %49 = vector.broadcast %cst_27 : f32 to vector<1x8xf32>
      %c0_28 = arith.constant 0 : index
      %c0_29 = arith.constant 0 : index
      %50 = vector.load %arg9[%c0_28, %c0_29] : memref<1x8xf32, #tpu.memory_space<vmem>>, vector<1x8xf32>
      tpu.vector_store %arg9[%c0_28, %c0_29], %49 {strides = array<i32>} : memref<1x8xf32, #tpu.memory_space<vmem>>, vector<1x8xf32>,
    } else {
    }
    %c0 = arith.constant 0 : index
    %c0_1 = arith.constant 0 : index
    %c0_2 = arith.constant 0 : index
    %3 = vector.load %arg2[%c0, %c0_1, %c0_2] : memref<1x16x32xf32, #tpu.memory_space<vmem>>, vector<1x16x32xf32>
    %4 = vector.shape_cast %3 : vector<1x16x32xf32> to vector<16x32xf32>
    %5 = arith.truncf %4 : vector<16x32xf32> to vector<16x32xbf16>
    %c0_3 = arith.constant 0 : index
    %c0_4 = arith.constant 0 : index
    %6 = vector.load %arg3[%c0_3, %c0_4] : memref<32x8xbf16, #tpu.memory_space<vmem>>, vector<32x8xbf16>
    %cst = arith.constant dense<0.000000e+00> : vector<16x8xf32>
    %7 = tpu.matmul %5, %6, %cst {dimension_numbers = #tpu.dot_dimension_numbers<[1], [0], [0], [1], [0, 0, 1, 1], [], []>} : vector<16x32xbf16>, vector<32x8xbf16>, vector<16x8xf32> -> vector<16x8xf32>
    %c0_5 = arith.constant 0 : index
    %c0_6 = arith.constant 0 : index
    %8 = vector.load %arg4[%c0_5, %c0_6] : memref<1x8xf32, #tpu.memory_space<vmem>>, vector<1x8xf32>
    %9 = vector.broadcast %8 : vector<1x8xf32> to vector<16x8xf32>
    %10 = arith.addf %7, %9 : vector<16x8xf32>
    %11 = math.absf %10 : vector<16x8xf32>
    %12 = math.exp %11 : vector<16x8xf32>
    %cst_7 = arith.constant 1.000000e+00 : f32
    %13 = vector.broadcast %cst_7 : f32 to vector<16x8xf32>
    %14 = arith.subf %12, %13 : vector<16x8xf32>
    %cst_8 = arith.constant 0.000000e+00 : f32
    %15 = vector.broadcast %cst_8 : f32 to vector<16x8xf32>
    %16 = arith.cmpf oge, %10, %15 : vector<16x8xf32>
    %cst_9 = arith.constant 0.000000e+00 : f32
    %17 = vector.broadcast %cst_9 : f32 to vector<16x8xf32>
    %18 = arith.subf %17, %14 : vector<16x8xf32>
    %19 = arith.select %16, %14, %18 : vector<16x8xi1>, vector<16x8xf32>
    %cst_10 = arith.constant -1.000000e+02 : f32
    %cst_11 = arith.constant 1.000000e+02 : f32
    %20 = vector.broadcast %cst_10 : f32 to vector<16x8xf32>
    %21 = arith.maximumf %20, %19 : vector<16x8xf32>
    %22 = vector.broadcast %cst_11 : f32 to vector<16x8xf32>
    %23 = arith.minimumf %22, %21 : vector<16x8xf32>
    %c1_i32 = arith.constant 1 : i32
    %24 = tpu.dynamic_rotate %23 by %c1_i32 dim 0 : vector<16x8xf32>, i32 -> vector<16x8xf32>
    %25 = tpu.iota {dimensions = array<i32: 0>} : vector<16x1xi32>
    %c0_i32_12 = arith.constant 0 : i32
    %26 = vector.broadcast %c0_i32_12 : i32 to vector<16x1xi32>
    %27 = arith.cmpi eq, %25, %26 : vector<16x1xi32>
    %c0_13 = arith.constant 0 : index
    %c0_14 = arith.constant 0 : index
    %28 = vector.load %arg9[%c0_13, %c0_14] : memref<1x8xf32, #tpu.memory_space<vmem>>, vector<1x8xf32>
    %29 = vector.shape_cast %27 : vector<16x1xi1> to vector<16x1xi1>
    %30 = vector.broadcast %29 : vector<16x1xi1> to vector<16x8xi1>
    %31 = vector.shape_cast %28 : vector<1x8xf32> to vector<1x8xf32>
    %32 = vector.broadcast %31 : vector<1x8xf32> to vector<16x8xf32>
    %33 = arith.select %30, %32, %24 : vector<16x8xi1>, vector<16x8xf32>
    %34 = vector.extract_strided_slice %23 {offsets = [15, 0], sizes = [1, 8], strides = [1, 1]} : vector<16x8xf32> to vector<1x8xf32>
    %c0_15 = arith.constant 0 : index
    %c0_16 = arith.constant 0 : index
    %35 = vector.load %arg9[%c0_15, %c0_16] : memref<1x8xf32, #tpu.memory_space<vmem>>, vector<1x8xf32>
    tpu.vector_store %arg9[%c0_15, %c0_16], %34 {strides = array<i32>} : memref<1x8xf32, #tpu.memory_space<vmem>>, vector<1x8xf32>,
    %36 = arith.truncf %23 : vector<16x8xf32> to vector<16x8xbf16>
    %c0_17 = arith.constant 0 : index
    %c0_18 = arith.constant 0 : index
    %37 = vector.load %arg5[%c0_17, %c0_18] : memref<8x8xbf16, #tpu.memory_space<vmem>>, vector<8x8xbf16>
    %cst_19 = arith.constant dense<0.000000e+00> : vector<16x8xf32>
    %38 = tpu.matmul %36, %37, %cst_19 {dimension_numbers = #tpu.dot_dimension_numbers<[1], [0], [0], [1], [0, 0, 1, 1], [], []>} : vector<16x8xbf16>, vector<8x8xbf16>, vector<16x8xf32> -> vector<16x8xf32>
    %39 = arith.truncf %33 : vector<16x8xf32> to vector<16x8xbf16>
    %c0_20 = arith.constant 0 : index
    %c0_21 = arith.constant 0 : index
    %40 = vector.load %arg6[%c0_20, %c0_21] : memref<8x8xbf16, #tpu.memory_space<vmem>>, vector<8x8xbf16>
    %cst_22 = arith.constant dense<0.000000e+00> : vector<16x8xf32>
    %41 = tpu.matmul %39, %40, %cst_22 {dimension_numbers = #tpu.dot_dimension_numbers<[1], [0], [0], [1], [0, 0, 1, 1], [], []>} : vector<16x8xbf16>, vector<8x8xbf16>, vector<16x8xf32> -> vector<16x8xf32>
    %42 = arith.addf %38, %41 : vector<16x8xf32>
    %c0_23 = arith.constant 0 : index
    %c0_24 = arith.constant 0 : index
    %c0_25 = arith.constant 0 : index
    %43 = vector.load %arg7[%c0_23, %c0_24, %c0_25] : memref<1x16x8xf32, #tpu.memory_space<vmem>>, vector<1x16x8xf32>
    %44 = vector.shape_cast %43 : vector<1x16x8xf32> to vector<16x8xf32>
    %45 = vector.shape_cast %42 : vector<16x8xf32> to vector<1x16x8xf32>
    tpu.vector_store %arg7[%c0_23, %c0_24, %c0_25], %45 {strides = array<i32>} : memref<1x16x8xf32, #tpu.memory_space<vmem>>, vector<1x16x8xf32>,
    %c2_i32 = arith.constant 2 : i32
    %46 = arith.cmpi eq, %arg1, %c2_i32 : i32
    %47 = arith.extui %46 : i1 to i32
    %c0_i32_26 = arith.constant 0 : i32
    %48 = arith.cmpi ne, %47, %c0_i32_26 : i32
    scf.if %48 {
      %49 = vector.extract_strided_slice %36 {offsets = [7, 0], sizes = [1, 8], strides = [1, 1]} : vector<16x8xbf16> to vector<1x8xbf16>
      %c0_27 = arith.constant 0 : index
      %c0_28 = arith.constant 0 : index
      %50 = vector.load %arg6[%c0_27, %c0_28] : memref<8x8xbf16, #tpu.memory_space<vmem>>, vector<8x8xbf16>
      %cst_29 = arith.constant dense<0.000000e+00> : vector<1x8xf32>
      %51 = tpu.matmul %49, %50, %cst_29 {dimension_numbers = #tpu.dot_dimension_numbers<[1], [0], [0], [1], [0, 0, 1, 1], [], []>} : vector<1x8xbf16>, vector<8x8xbf16>, vector<1x8xf32> -> vector<1x8xf32>
      %c0_30 = arith.constant 0 : index
      %c0_31 = arith.constant 0 : index
      %c0_32 = arith.constant 0 : index
      %52 = vector.load %arg8[%c0_30, %c0_31, %c0_32] : memref<1x1x8xf32, #tpu.memory_space<vmem>>, vector<1x1x8xf32>
      %53 = vector.shape_cast %52 : vector<1x1x8xf32> to vector<1x8xf32>
      %54 = vector.shape_cast %51 : vector<1x8xf32> to vector<1x1x8xf32>
      tpu.vector_store %arg8[%c0_30, %c0_31, %c0_32], %54 {strides = array<i32>} : memref<1x1x8xf32, #tpu.memory_space<vmem>>, vector<1x1x8xf32>,
    } else {
    }
    return
  }
  func.func @transform_0(%arg0: i32, %arg1: i32) -> (i32, i32, i32) {
    %c0_i32 = arith.constant 0 : i32
    %c0_i32_0 = arith.constant 0 : i32
    return %arg0, %arg1, %c0_i32 : i32, i32, i32
  }
  func.func @transform_1(%arg0: i32, %arg1: i32) -> (i32, i32) {
    %c0_i32 = arith.constant 0 : i32
    %c0_i32_0 = arith.constant 0 : i32
    %c0_i32_1 = arith.constant 0 : i32
    return %c0_i32, %c0_i32_0 : i32, i32
  }
  func.func @transform_2(%arg0: i32, %arg1: i32) -> (i32, i32) {
    %c0_i32 = arith.constant 0 : i32
    %c0_i32_0 = arith.constant 0 : i32
    %c0_i32_1 = arith.constant 0 : i32
    return %c0_i32, %c0_i32_0 : i32, i32
  }
  func.func @transform_3(%arg0: i32, %arg1: i32) -> (i32, i32) {
    %c0_i32 = arith.constant 0 : i32
    %c0_i32_0 = arith.constant 0 : i32
    %c0_i32_1 = arith.constant 0 : i32
    return %c0_i32, %c0_i32_0 : i32, i32
  }
  func.func @transform_4(%arg0: i32, %arg1: i32) -> (i32, i32) {
    %c0_i32 = arith.constant 0 : i32
    %c0_i32_0 = arith.constant 0 : i32
    %c0_i32_1 = arith.constant 0 : i32
    return %c0_i32, %c0_i32_0 : i32, i32
  }
  func.func @transform_5(%arg0: i32, %arg1: i32) -> (i32, i32, i32) {
    %c0_i32 = arith.constant 0 : i32
    %c0_i32_0 = arith.constant 0 : i32
    return %arg0, %arg1, %c0_i32 : i32, i32, i32
  }
  func.func @transform_6(%arg0: i32, %arg1: i32) -> (i32, i32, i32) {
    %c0_i32 = arith.constant 0 : i32
    %c0_i32_0 = arith.constant 0 : i32
    %c0_i32_1 = arith.constant 0 : i32
    return %arg0, %c0_i32, %c0_i32_0 : i32, i32, i32
  }
}

</mosaic_0001>

<llo_original>
// kernel: tpu_custom_call.1
$region0: #{tpu_custom_call.1}
  #allocation0 [shape = 'u32[]', space=smem, size = 0x4, offset = 0x4, fixed_abs, tag = 'smem constant byte address 0x4 - core index']
  #allocation1 [shape = 'u32[72,128]{1,0:T(1,128)}', space=vmem, size = 0x9000, scoped, tag = 'internal scratch']
  #allocation2 [shape = 'f32[1,8]{1,0:T(1,128)}', space=vmem, size = 0x200, scoped, tag = 'scratch operand']
  %s0 = inlined_call_operand.vmem [shape: f32[2,40,32], index: 0, kind: input, shape index: {}]
  %s1 = inlined_call_operand.vmem [shape: bf16[32,8], index: 1, kind: input, shape index: {}]
  %s2 = inlined_call_operand.vmem [shape: f32[1,8], index: 2, kind: input, shape index: {}]
  %s3 = inlined_call_operand.vmem [shape: bf16[8,8], index: 3, kind: input, shape index: {}]
  %s4 = inlined_call_operand.vmem [shape: bf16[8,8], index: 4, kind: input, shape index: {}]
  %s5 = inlined_call_operand.vmem [shape: f32[2,48,8], index: 5, kind: output, shape index: {0}]
  %s6 = inlined_call_operand.hbm [shape: f32[2,1,8], index: 6, kind: output, shape index: {1}]
  %7 = xla_tuple %s5, %s6
  %s8 = sld [smem:[#allocation0]]
  $region69: #{tpu_custom_call.1} parent=0
    _
  %s10 = ssub.s32 1, %s8
  %s11 = scalar_select 0, %s10, %s8
  $region1: #{tpu_custom_call.1} parent=0
    #allocation3 [shape = 'u8[1024]{0}', space=vmem, size = 0x400, scoped, tag = 'output window, operand 1']
    #allocation4 [shape = 's32[2]{0}', space=sflag, size = 0x8, scoped, tag = 'scoped memory for tpu_custom_call.1']
    %12 = vsyncpa [#allocation4], 0
    %s13 = scalar_lea.sflag [#allocation4], 1
    %14 = vsyncpa %s13, 0
    loop: start=0, step=1, limit=8
    $region2: #{tpu_custom_call.1} parent=1 // loop_pre_header
      _
    $region3: #{tpu_custom_call.1} parent=1 // loop_header
      %s16 = sphi 0, %s20
      %p17 = scmp.ge.s32.totalorder %s16, 8
      %s23 = sphi 0, %s35
      %s24 = sphi 0, %s31
      %s25 = sphi 0, %s23
      %s26 = sphi 0, %s24
      %s27 = sphi 0, %s25
      %s28 = sphi 0, %s26
      %s40 = sphi 0, %s42
      %s43 = sphi 0, %s40
      %s44 = sphi 0, %s43
      %s60 = sphi 0, %s44
      %s64 = sphi 0, %s64
      %s66 = sphi 0, %s64
      %s67 = sphi 0, %s66
      %s81 = sphi 0, %s67
      %s85 = sphi 0, %s85
      %s87 = sphi 0, %s85
      %s88 = sphi 0, %s87
      %s102 = sphi 0, %s88
      %s106 = sphi 0, %s106
      %s108 = sphi 0, %s106
      %s109 = sphi 0, %s108
      %s123 = sphi 0, %s109
      %s127 = sphi 0, %s127
      %s129 = sphi 0, %s127
      %s130 = sphi 0, %s129
      %s144 = sphi 0, %s130
      %s152 = sphi 0, %s154
      %s155 = sphi 0, %s152
      %s156 = sphi 0, %s155
      %s172 = sphi 0, %s156
      %s178 = sphi 0, %s180
      %s181 = sphi 0, %s178
      %s182 = sphi 0, %s181
      %s198 = sphi 0, %s182
    $region4: #{tpu_custom_call.1} parent=1 // loop_header_branch
      %19 = sbr.rel (%p17) target = $region8
    $region5: #{tpu_custom_call.1} parent=1 // loop_body
      %s21 = ssub.s32 %s16, 1
      %s22 = ssub.s32 %s16, 2
      %s29 = sadd.s32 1, %s24
      %p30 = scmp.ge.s32.totalorder %s29, 3
      %s31 = scalar_select %p30, 0, %s29
      %s32 = sadd.s32 1, %s23
      %s33 = scalar_select %p30, %s32, %s23
      %p34 = scmp.ge.s32.totalorder %s33, 2
      %s35 = scalar_select %p34, 0, %s33
      %s36 = ssub.s32 %s23, %s35
      %s37 = ssub.s32 %s24, %s31
      %s38 = sor.u32 %s36, %s37
      %p39 = scmp.eq.s32.totalorder %s38, 0
      %s41 = sadd.s32 %s40, 1
      %s42 = scalar_select %p39, %s40, %s41
      %p45 = pneg %p39
      %p46 = scmp.eq.s32.totalorder %s16, 5
      %p47 = por %p45, %p46
      %p48 = scmp.ne.s32.totalorder %s40, %s43
      %p49 = scmp.eq.s32.totalorder %s16, 0
      %p50 = por %p48, %p49
      %p51 = scmp.ne.s32.totalorder %s40, %s43
      %p52 = scmp.eq.s32.totalorder %s21, 5
      %p53 = por %p51, %p52
      %p54 = scmp.ne.s32.totalorder %s43, %s44
      %p55 = scmp.eq.s32.totalorder %s21, 0
      %p56 = por %p54, %p55
      %p57 = scmp.ne.s32.totalorder %s43, %s44
      %p58 = scmp.eq.s32.totalorder %s22, 5
      %p59 = por %p57, %p58
      %p61 = scmp.ne.s32.totalorder %s44, %s60
      %p62 = scmp.eq.s32.totalorder %s22, 0
      %p63 = por %p61, %p62
      %s65 = sadd.s32 %s64, 1
      %p68 = scmp.eq.s32.totalorder %s16, 5
      %p69 = scmp.ne.s32.totalorder %s64, %s66
      %p70 = scmp.eq.s32.totalorder %s16, 0
      %p71 = por %p69, %p70
      %p72 = scmp.ne.s32.totalorder %s64, %s66
      %p73 = scmp.eq.s32.totalorder %s21, 5
      %p74 = por %p72, %p73
      %p75 = scmp.ne.s32.totalorder %s66, %s67
      %p76 = scmp.eq.s32.totalorder %s21, 0
      %p77 = por %p75, %p76
      %p78 = scmp.ne.s32.totalorder %s66, %s67
      %p79 = scmp.eq.s32.totalorder %s22, 5
      %p80 = por %p78, %p79
      %p82 = scmp.ne.s32.totalorder %s67, %s81
      %p83 = scmp.eq.s32.totalorder %s22, 0
      %p84 = por %p82, %p83
      %s86 = sadd.s32 %s85, 1
      %p89 = scmp.eq.s32.totalorder %s16, 5
      %p90 = scmp.ne.s32.totalorder %s85, %s87
      %p91 = scmp.eq.s32.totalorder %s16, 0
      %p92 = por %p90, %p91
      %p93 = scmp.ne.s32.totalorder %s85, %s87
      %p94 = scmp.eq.s32.totalorder %s21, 5
      %p95 = por %p93, %p94
      %p96 = scmp.ne.s32.totalorder %s87, %s88
      %p97 = scmp.eq.s32.totalorder %s21, 0
      %p98 = por %p96, %p97
      %p99 = scmp.ne.s32.totalorder %s87, %s88
      %p100 = scmp.eq.s32.totalorder %s22, 5
      %p101 = por %p99, %p100
      %p103 = scmp.ne.s32.totalorder %s88, %s102
      %p104 = scmp.eq.s32.totalorder %s22, 0
      %p105 = por %p103, %p104
      %s107 = sadd.s32 %s106, 1
      %p110 = scmp.eq.s32.totalorder %s16, 5
      %p111 = scmp.ne.s32.totalorder %s106, %s108
      %p112 = scmp.eq.s32.totalorder %s16, 0
      %p113 = por %p111, %p112
      %p114 = scmp.ne.s32.totalorder %s106, %s108
      %p115 = scmp.eq.s32.totalorder %s21, 5
      %p116 = por %p114, %p115
      %p117 = scmp.ne.s32.totalorder %s108, %s109
      %p118 = scmp.eq.s32.totalorder %s21, 0
      %p119 = por %p117, %p118
      %p120 = scmp.ne.s32.totalorder %s108, %s109
      %p121 = scmp.eq.s32.totalorder %s22, 5
      %p122 = por %p120, %p121
      %p124 = scmp.ne.s32.totalorder %s109, %s123
      %p125 = scmp.eq.s32.totalorder %s22, 0
      %p126 = por %p124, %p125
      %s128 = sadd.s32 %s127, 1
      %p131 = scmp.eq.s32.totalorder %s16, 5
      %p132 = scmp.ne.s32.totalorder %s127, %s129
      %p133 = scmp.eq.s32.totalorder %s16, 0
      %p134 = por %p132, %p133
      %p135 = scmp.ne.s32.totalorder %s127, %s129
      %p136 = scmp.eq.s32.totalorder %s21, 5
      %p137 = por %p135, %p136
      %p138 = scmp.ne.s32.totalorder %s129, %s130
      %p139 = scmp.eq.s32.totalorder %s21, 0
      %p140 = por %p138, %p139
      %p141 = scmp.ne.s32.totalorder %s129, %s130
      %p142 = scmp.eq.s32.totalorder %s22, 5
      %p143 = por %p141, %p142
      %p145 = scmp.ne.s32.totalorder %s130, %s144
      %p146 = scmp.eq.s32.totalorder %s22, 0
      %p147 = por %p145, %p146
      %s148 = ssub.s32 %s23, %s35
      %s149 = ssub.s32 %s24, %s31
      %s150 = sor.u32 %s148, %s149
      %p151 = scmp.eq.s32.totalorder %s150, 0
      %s153 = sadd.s32 %s152, 1
      %s154 = scalar_select %p151, %s152, %s153
      %p157 = pneg %p151
      %p158 = scmp.eq.s32.totalorder %s16, 5
      %p159 = por %p157, %p158
      %p160 = scmp.ne.s32.totalorder %s152, %s155
      %p161 = scmp.eq.s32.totalorder %s16, 0
      %p162 = por %p160, %p161
      %p163 = scmp.ne.s32.totalorder %s152, %s155
      %p164 = scmp.eq.s32.totalorder %s21, 5
      %p165 = por %p163, %p164
      %p166 = scmp.ne.s32.totalorder %s155, %s156
      %p167 = scmp.eq.s32.totalorder %s21, 0
      %p168 = por %p166, %p167
      %p169 = scmp.ne.s32.totalorder %s155, %s156
      %p170 = scmp.eq.s32.totalorder %s22, 5
      %p171 = por %p169, %p170
      %p173 = scmp.ne.s32.totalorder %s156, %s172
      %p174 = scmp.eq.s32.totalorder %s22, 0
      %p175 = por %p173, %p174
      %s176 = ssub.s32 %s23, %s35
      %p177 = scmp.eq.s32.totalorder %s176, 0
      %s179 = sadd.s32 %s178, 1
      %s180 = scalar_select %p177, %s178, %s179
      %p183 = pneg %p177
      %p184 = scmp.eq.s32.totalorder %s16, 5
      %p185 = por %p183, %p184
      %p186 = scmp.ne.s32.totalorder %s178, %s181
      %p187 = scmp.eq.s32.totalorder %s16, 0
      %p188 = por %p186, %p187
      %p189 = scmp.ne.s32.totalorder %s178, %s181
      %p190 = scmp.eq.s32.totalorder %s21, 5
      %p191 = por %p189, %p190
      %p192 = scmp.ne.s32.totalorder %s181, %s182
      %p193 = scmp.eq.s32.totalorder %s21, 0
      %p194 = por %p192, %p193
      %p195 = scmp.ne.s32.totalorder %s181, %s182
      %p196 = scmp.eq.s32.totalorder %s22, 5
      %p197 = por %p195, %p196
      %p199 = scmp.ne.s32.totalorder %s182, %s198
      %p200 = scmp.eq.s32.totalorder %s22, 0
      %p201 = por %p199, %p200
      %p202 = scmp.le.s32.totalorder 1, %s16
      %p203 = scmp.lt.s32.totalorder %s16, 7
      %p204 = pnand %p202, %p203
      %p205 = pneg %p204
      // Predicated region
      $region9: #{tpu_custom_call.1} parent=5 // pred_check
        _
      $region10: #{tpu_custom_call.1} parent=5 // pred_check_branch
        %207 = sbr.rel (%p204) target = $region12
      $region11: #{tpu_custom_call.1} parent=5 // pred_region
        %s208 = ssub.s32 %s16, 1
        // Predicated region
        $region13: #{tpu_custom_call.1} parent=11 // pred_check
          %p209 = pneg %p77
        $region14: #{tpu_custom_call.1} parent=11 // pred_check_branch
          %211 = sbr.rel (%p209) target = $region16
        $region15: #{tpu_custom_call.1} parent=11 // pred_region
          _
        $region16: #{tpu_custom_call.1} parent=11 // pred_fallthru
          _
        // Predicated region
        $region17: #{tpu_custom_call.1} parent=11 // pred_check
          %p212 = pneg %p98
        $region18: #{tpu_custom_call.1} parent=11 // pred_check_branch
          %214 = sbr.rel (%p212) target = $region20
        $region19: #{tpu_custom_call.1} parent=11 // pred_region
          _
        $region20: #{tpu_custom_call.1} parent=11 // pred_fallthru
          _
        // Predicated region
        $region21: #{tpu_custom_call.1} parent=11 // pred_check
          %p215 = pneg %p119
        $region22: #{tpu_custom_call.1} parent=11 // pred_check_branch
          %217 = sbr.rel (%p215) target = $region24
        $region23: #{tpu_custom_call.1} parent=11 // pred_region
          _
        $region24: #{tpu_custom_call.1} parent=11 // pred_fallthru
          _
        // Predicated region
        $region25: #{tpu_custom_call.1} parent=11 // pred_check
          %p218 = pneg %p140
        $region26: #{tpu_custom_call.1} parent=11 // pred_check_branch
          %220 = sbr.rel (%p218) target = $region28
        $region27: #{tpu_custom_call.1} parent=11 // pred_region
          _
        $region28: #{tpu_custom_call.1} parent=11 // pred_fallthru
          _
      $region12: #{tpu_custom_call.1} parent=5 // pred_fallthru
        _
      %p221 = scmp.lt.s32.totalorder %s16, 6
      // Predicated region
      $region29: #{tpu_custom_call.1} parent=5 // pred_check
        %p222 = pneg %p221
      $region30: #{tpu_custom_call.1} parent=5 // pred_check_branch
        %224 = sbr.rel (%p222) target = $region32
      $region31: #{tpu_custom_call.1} parent=5 // pred_region
        // Predicated region
        $region33: #{tpu_custom_call.1} parent=31 // pred_check
          %p225 = pneg %p50
        $region34: #{tpu_custom_call.1} parent=31 // pred_check_branch
          %227 = sbr.rel (%p225) target = $region36
        $region35: #{tpu_custom_call.1} parent=31 // pred_region
          %s228 = smul.u32 2, %s24
          %s229 = ssub.s32 5, %s228
          %p230 = scmp.lt.s32.totalorder %s229, 2
          %s231 = scalar_select %p230, %s229, 2
          %s232 = smul.u32 8, %s231
          %p233 = scmp.lt.s32.totalorder %s23, 1
          %s234 = scalar_select %p233, %s23, 1
          %p235 = scmp.lt.s32.totalorder %s228, 4
          %s236 = scalar_select %p235, %s228, 4
          %s237 = smul.addr %s234, 5
          %s238 = sadd.s32 %s236, %s237
          %s239 = smul.addr %s238, 8
          %s240 = scalar_lea.vmem %s0, %s239
          %s241 = smul.u32 2, %s24
          %s242 = ssub.s32 5, %s241
          %p243 = scmp.lt.s32.totalorder %s242, 2
          %s244 = scalar_select %p243, %s242, 2
          %s245 = smul.u32 8, %s244
        $region36: #{tpu_custom_call.1} parent=31 // pred_fallthru
          _
      $region32: #{tpu_custom_call.1} parent=5 // pred_fallthru
        _
      %p246 = scmp.le.s32.totalorder 1, %s16
      %p247 = scmp.lt.s32.totalorder %s16, 7
      %p248 = pnand %p246, %p247
      %p249 = pneg %p248
      // Predicated region
      $region37: #{tpu_custom_call.1} parent=5 // pred_check
        _
      $region38: #{tpu_custom_call.1} parent=5 // pred_check_branch
        %251 = sbr.rel (%p248) target = $region40
      $region39: #{tpu_custom_call.1} parent=5 // pred_region
        %s252 = ssub.s32 %s16, 1
        %s253 = smul.u32 2, %s26
        %s254 = ssub.s32 5, %s253
        %p255 = scmp.lt.s32.totalorder %s254, 2
        %s256 = scalar_select %p255, %s254, 2
        %s257 = smul.u32 8, %s256
        %p258 = scmp.lt.s32.totalorder %s25, 1
        %s259 = scalar_select %p258, %s25, 1
        %p260 = scmp.lt.s32.totalorder %s253, 4
        %s261 = scalar_select %p260, %s253, 4
        %s262 = smul.addr %s259, 5
        %s263 = sadd.s32 %s261, %s262
        %s264 = smul.addr %s263, 8
        %s265 = scalar_lea.vmem %s0, %s264
        %p266 = pneg %p56
        %p267 = pneg %p53
        %p268 = pneg %p77
        %p269 = pneg %p74
        %p270 = pneg %p98
        %p271 = pneg %p95
        %p272 = pneg %p119
        %p273 = pneg %p116
        %p274 = pneg %p140
        %p275 = pneg %p137
        %p276 = pneg %p168
        %p277 = pneg %p165
        %s278 = smul.u32 2, %s26
        %p279 = scmp.lt.s32.totalorder %s25, 1
        %s280 = scalar_select %p279, %s25, 1
        %p281 = scmp.lt.s32.totalorder %s278, 5
        %s282 = scalar_select %p281, %s278, 5
        %s283 = smul.addr %s280, 6
        %s284 = sadd.s32 %s282, %s283
        %s285 = smul.addr %s284, 8
        %s286 = scalar_lea.vmem %s5, %s285
        %p287 = pneg %p194
        %p288 = pneg %p191
        %s289 = sand.u32 %s181, 1
        %s290 = scalar_lea.sflag [#allocation4], %s289
        %s291 = sand.u32 %s181, 1
        %s292 = scalar_lea.vmem [#allocation3], %s291
        %s293 = smul.u32 2, %s26
        %s294 = ssub.s32 5, %s293
        %p295 = scmp.lt.s32.totalorder %s294, 2
        %s296 = scalar_select %p295, %s294, 2
        %s297 = smul.u32 8, %s296
        %p298 = scmp.lt.s32.totalorder %s25, 1
        %s299 = scalar_select %p298, %s25, 1
        %p300 = scmp.lt.s32.totalorder %s293, 4
        %s301 = scalar_select %p300, %s293, 4
        %s302 = smul.addr %s299, 5
        %s303 = sadd.s32 %s301, %s302
        %s304 = smul.addr %s303, 8
        %s305 = scalar_lea.vmem %s0, %s304
        %s306 = smul.u32 2, %s26
        %s307 = ssub.s32 5, %s306
        %p308 = scmp.lt.s32.totalorder %s307, 2
        %s309 = scalar_select %p308, %s307, 2
        %s310 = smul.u32 8, %s309
        %s311 = smul.u32 2, %s26
        %p312 = scmp.lt.s32.totalorder %s25, 1
        %s313 = scalar_select %p312, %s25, 1
        %p314 = scmp.lt.s32.totalorder %s311, 5
        %s315 = scalar_select %p314, %s311, 5
        %s316 = smul.addr %s313, 6
        %s317 = sadd.s32 %s315, %s316
        %s318 = smul.addr %s317, 8
        %s319 = scalar_lea.vmem %s5, %s318
        %s320 = smul.u32 2, %s26
        %p322 = scmp.eq.s32.totalorder %s26, 0
        // Predicated region
        $region41: #{tpu_custom_call.1} parent=39 // pred_check
          %p323 = pneg %p322
        $region42: #{tpu_custom_call.1} parent=39 // pred_check_branch
          %325 = sbr.rel (%p323) target = $region44
        $region43: #{tpu_custom_call.1} parent=39 // pred_region
          %vm326 = vcmask 57344
          %327 = vst.msk [vmem:[#allocation2] sm:$0x1] %vm326, 0.0
        $region44: #{tpu_custom_call.1} parent=39 // pred_fallthru
          _
        %v328 = vld [vmem:[%s305] sm:$0xff]
        %v329 = vld [vmem:[%s305 + $0x8] sm:$0xff]
        %v330 = vpack.c.bf16 %v329, %v328
        %v331 = vld [vmem:[%s1] sm:$0xf]
        %v332 = vld [vmem:[%s1 + $0x4] sm:$0xf]
        %v333 = vld [vmem:[%s1 + $0x8] sm:$0xf]
        %v334 = vld [vmem:[%s1 + $0xc] sm:$0xf]
        %v335 = vld [vmem:[%s2] sm:$0x1]
        %v337 = vperm.slane %v335, 0
        %v343 = vunpack.c.l.b16 %v331
        %v344 = vunpack.c.l.b16 %v332
        %v345 = vunpack.c.l.b16 %v333
        %v346 = vunpack.c.l.b16 %v334
        %v347 = vpack.c.b16 %v344, %v343
        %v348 = vpack.c.b16 %v346, %v345
        %vm351 = vcmask 261120
        %v353 = vsel %vm351, %v330, 0
        %355 = vmatpush.bf16.msra.mxu0 0
        %356 = vmatpush.bf16.msra.mxu0 0
        %357 = vmatpush.bf16.msra.mxu0 0
        %358 = vmatpush.bf16.msra.mxu0 0
        %359 = vmatpush.bf16.msra.mxu0 0
        %360 = vmatpush.bf16.msra.mxu0 0
        %361 = vmatpush.bf16.msra.mxu0 %v348
        %362 = vmatpush.bf16.msra.mxu0 %v347
        %363 = vmatmul.bf16.gmra.mxu0 %v353
        %v364 = vpop.f32.mrf.mxu0
        %v365 = vadd.f32 %v337, %v364
        %v366 = vpop.f32.mrf.mxu0
        %v367 = vadd.f32 %v337, %v366
        %368 = vdwg.mxu0
        %v369 = vand.u32 2147483647, %v365
        %v370 = vand.u32 2147483647, %v367
        %v371 = vmul.f32 %v369, 1.442695
        %v372 = vpow.pop %v371
        %v373 = vmul.f32 %v370, 1.442695
        %v374 = vpow.pop %v373
        %v375 = vsub.f32 %v372, 1.0
        %v376 = vsub.f32 %v374, 1.0
        %vm377 = vcmp.ge.f32.partialorder %v365, 0.0
        %vm378 = vcmp.ge.f32.partialorder %v367, 0.0
        %v379 = vsub.f32 0.0, %v375
        %v380 = vsub.f32 0.0, %v376
        %v381 = vsel %vm377, %v375, %v379
        %v382 = vsel %vm378, %v376, %v380
        %v383 = vmax.f32 %v381, -100.0
        %v384 = vmax.f32 %v382, -100.0
        %v385 = vmin.f32 %v383, 100.0
        %v386 = vmin.f32 %v384, 100.0
        %v387 = vrot.slane %v385, 7
        %v388 = vrot.slane %v386, 7
        %v389 = vlaneseq
        %v390 = vshrl.u32 %v389, 7
        %vm391 = vcmp.lt.s32.totalorder %v390, 1
        %v392 = vsel %vm391, %v387, %v388
        %v393 = vsel %vm391, %v388, %v387
        %v394 = vadd.s32 %v390, 8
        %vm395 = vcmp.eq.s32.totalorder %v390, 0
        %vm396 = vcmp.eq.s32.totalorder %v394, 0
        %v397 = vld [vmem:[#allocation2] sm:$0x1]
        %v398 = vsel %vm395, 1, 0
        %v399 = vsel %vm396, 1, 0
        %vm400 = vcmp.eq.s32.totalorder %v398, 1
        %vm401 = vcmp.eq.s32.totalorder %v399, 1
        %v403 = vperm.slane %v397, 0
        %v405 = vsel %vm400, %v403, %v393
        %v406 = vsel %vm401, %v403, %v392
        %vm407 = vcmask 64519
        %408 = vst.msk [vmem:[#allocation2 - $0x7] sm:$0x80] %vm407, %v386
        %v409 = vpack.c.bf16 %v385, %v385
        %v410 = vpack.c.bf16 %v386, %v386
        %v411 = vld [vmem:[%s3] sm:$0xf]
        %v412 = vpack.c.bf16 %v406, %v405
        %v413 = vld [vmem:[%s4] sm:$0xf]
        %vm414 = vcmask 64512
        %v416 = vsel %vm414, %v412, 0
        %vm418 = vcmask 1043456
        %v420 = vsel %vm418, %v413, 0
        %422 = vmatpush.bf16.msra.mxu0 0
        %423 = vmatpush.bf16.msra.mxu0 0
        %424 = vmatpush.bf16.msra.mxu0 0
        %425 = vmatpush.bf16.msra.mxu0 0
        %426 = vmatpush.bf16.msra.mxu0 0
        %427 = vmatpush.bf16.msra.mxu0 0
        %428 = vmatpush.bf16.msra.mxu0 0
        %429 = vmatpush.bf16.msra.mxu0 %v420
        %430 = vmatmul.bf16.gmra.mxu0 %v416
        %v431 = vpop.f32.mrf.mxu0
        %v432 = vadd.f32 0.0, %v431
        %v433 = vpop.f32.mrf.mxu0
        %v434 = vadd.f32 0.0, %v433
        %435 = vdwg.mxu0
        %v438 = vunpack.c.l.b16 %v409
        %v439 = vunpack.c.l.b16 %v410
        %v440 = vpack.c.b16 %v439, %v438
        %v442 = vsel %vm414, %v440, 0
        %v445 = vsel %vm418, %v411, 0
        %447 = vmatpush.bf16.msra.mxu0 0
        %448 = vmatpush.bf16.msra.mxu0 0
        %449 = vmatpush.bf16.msra.mxu0 0
        %450 = vmatpush.bf16.msra.mxu0 0
        %451 = vmatpush.bf16.msra.mxu0 0
        %452 = vmatpush.bf16.msra.mxu0 0
        %453 = vmatpush.bf16.msra.mxu0 0
        %454 = vmatpush.bf16.msra.mxu0 %v445
        %455 = vmatmul.bf16.gmra.mxu0 %v442
        %v456 = vpop.f32.mrf.mxu0
        %v457 = vadd.f32 %v432, %v456
        %v458 = vpop.f32.mrf.mxu0
        %v459 = vadd.f32 %v434, %v458
        %460 = vdwg.mxu0
        %461 = vst.msk [vmem:[%s319] sm:$0xff] %vm414, %v457
        %462 = vst.msk [vmem:[%s319 + $0x8] sm:$0xff] %vm414, %v459
        %p463 = scmp.eq.s32.totalorder %s26, 2
        // Predicated region
        $region45: #{tpu_custom_call.1} parent=39 // pred_check
          %p464 = pneg %p463
        $region46: #{tpu_custom_call.1} parent=39 // pred_check_branch
          %466 = sbr.rel (%p464) target = $region48
        $region47: #{tpu_custom_call.1} parent=39 // pred_region
          %v467 = vld [vmem:[%s4] sm:$0xf]
          %v468 = vpack.c.b16 %v438, %v438
          %v470 = vshrl.u32 %v468, 16
          %v472 = vrot.slane %v470, 3
          %v474 = vsel %vm414, %v472, 0
          %v477 = vsel %vm418, %v467, 0
          %479 = vmatpush.bf16.msra.mxu0 0
          %480 = vmatpush.bf16.msra.mxu0 0
          %481 = vmatpush.bf16.msra.mxu0 0
          %482 = vmatpush.bf16.msra.mxu0 0
          %483 = vmatpush.bf16.msra.mxu0 0
          %484 = vmatpush.bf16.msra.mxu0 0
          %485 = vmatpush.bf16.msra.mxu0 0
          %486 = vmatpush.bf16.msra.mxu0 %v477
          %487 = vmatmul.bf16.gmra.mxu0 %v474
          %v488 = vpop.f32.mrf.mxu0
          %v489 = vadd.f32 0.0, %v488
          %v490 = vpop.f32.mrf.mxu0
          %491 = vdwg.mxu0
          %vm492 = vcmask 57344
          %493 = vst.msk [vmem:[%s292] sm:$0x1] %vm492, %v489
        $region48: #{tpu_custom_call.1} parent=39 // pred_fallthru
          _
        %s494 = smul.u32 2, %s26
        %p495 = scmp.lt.s32.totalorder %s25, 1
        %s496 = scalar_select %p495, %s25, 1
        %p497 = scmp.lt.s32.totalorder %s494, 5
        %s498 = scalar_select %p497, %s494, 5
        %s499 = smul.addr %s496, 6
        %s500 = sadd.s32 %s498, %s499
        %s501 = smul.addr %s500, 8
        %s502 = scalar_lea.vmem %s5, %s501
        %s503 = sand.u32 %s181, 1
        %s504 = scalar_lea.sflag [#allocation4], %s503
        %s505 = sand.u32 %s181, 1
        %s506 = scalar_lea.vmem [#allocation3], %s505
        // Predicated region
        $region49: #{tpu_custom_call.1} parent=39 // pred_check
          %p507 = pneg %p165
        $region50: #{tpu_custom_call.1} parent=39 // pred_check_branch
          %509 = sbr.rel (%p507) target = $region52
        $region51: #{tpu_custom_call.1} parent=39 // pred_region
          %s510 = smul.u32 2, %s26
        $region52: #{tpu_custom_call.1} parent=39 // pred_fallthru
          _
        // Predicated region
        $region53: #{tpu_custom_call.1} parent=39 // pred_check
          %p511 = pneg %p191
        $region54: #{tpu_custom_call.1} parent=39 // pred_check_branch
          %513 = sbr.rel (%p511) target = $region56
        $region55: #{tpu_custom_call.1} parent=39 // pred_region
          %515 = vsyncadd %s504, 0
          %s516 = scalar_lea.hbm %s6, %s25
          %s518 = sshll.u32 %s506, 4
          %s519 = int_to_ptr.vmem [resolvable:$true] %s518
          %s520 = sshll.u32 %s516, 4
          %s521 = int_to_ptr.hbm [resolvable:$true] %s520
          %523 = dma.vmem_to_hbm [thread:$0]  %s519, 16, %s521, %s504
        $region56: #{tpu_custom_call.1} parent=39 // pred_fallthru
          _
      $region40: #{tpu_custom_call.1} parent=5 // pred_fallthru
        _
      %p524 = scmp.le.s32.totalorder 2, %s16
      // Predicated region
      $region57: #{tpu_custom_call.1} parent=5 // pred_check
        %p525 = pneg %p524
      $region58: #{tpu_custom_call.1} parent=5 // pred_check_branch
        %527 = sbr.rel (%p525) target = $region60
      $region59: #{tpu_custom_call.1} parent=5 // pred_region
        %s528 = ssub.s32 %s16, 2
        // Predicated region
        $region61: #{tpu_custom_call.1} parent=59 // pred_check
          %p529 = pneg %p171
        $region62: #{tpu_custom_call.1} parent=59 // pred_check_branch
          %531 = sbr.rel (%p529) target = $region64
        $region63: #{tpu_custom_call.1} parent=59 // pred_region
          %s532 = smul.u32 2, %s28
          %p533 = scmp.lt.s32.totalorder %s27, 1
          %s534 = scalar_select %p533, %s27, 1
          %p535 = scmp.lt.s32.totalorder %s532, 5
          %s536 = scalar_select %p535, %s532, 5
          %s537 = smul.addr %s534, 6
          %s538 = sadd.s32 %s536, %s537
          %s539 = smul.addr %s538, 8
          %s540 = scalar_lea.vmem %s5, %s539
        $region64: #{tpu_custom_call.1} parent=59 // pred_fallthru
          _
        // Predicated region
        $region65: #{tpu_custom_call.1} parent=59 // pred_check
          %p541 = pneg %p197
        $region66: #{tpu_custom_call.1} parent=59 // pred_check_branch
          %543 = sbr.rel (%p541) target = $region68
        $region67: #{tpu_custom_call.1} parent=59 // pred_region
          %s544 = sand.u32 %s182, 1
          %s545 = scalar_lea.sflag [#allocation4], %s544
          %s546 = sand.u32 %s182, 1
          %s547 = scalar_lea.vmem [#allocation3], %s546
          %549 = dma.done %s545, 16
        $region68: #{tpu_custom_call.1} parent=59 // pred_fallthru
          _
      $region60: #{tpu_custom_call.1} parent=5 // pred_fallthru
        _
    $region6: #{tpu_custom_call.1} parent=1 // loop_footer
      %s20 = sadd.s32 1, %s16
    $region7: #{tpu_custom_call.1} parent=1 // loop_footer_branch
      %15 = sbr.rel target = $region3
    $region8: #{tpu_custom_call.1} parent=1 // loop_exit
      _
    %550 = vsyncpa [#allocation4], 1
    %s551 = scalar_lea.sflag [#allocation4], 1
    %552 = vsyncpa %s551, 1

// kernel: tpu_custom_call.1
$region0: #{tpu_custom_call.1}
  #allocation0 [shape = 'u32[]', space=smem, size = 0x4, offset = 0x4, fixed_abs, tag = 'smem constant byte address 0x4 - core index']
  #allocation1 [shape = 'u32[72,128]{1,0:T(1,128)}', space=vmem, size = 0x9000, scoped, tag = 'internal scratch']
  #allocation2 [shape = 'f32[1,8]{1,0:T(1,128)}', space=vmem, size = 0x200, scoped, tag = 'scratch operand']
  %s0 = inlined_call_operand.vmem [shape: f32[2,40,32], index: 0, kind: input, shape index: {}]
  %s1 = inlined_call_operand.vmem [shape: bf16[32,8], index: 1, kind: input, shape index: {}]
  %s2 = inlined_call_operand.vmem [shape: f32[1,8], index: 2, kind: input, shape index: {}]
  %s3 = inlined_call_operand.vmem [shape: bf16[8,8], index: 3, kind: input, shape index: {}]
  %s4 = inlined_call_operand.vmem [shape: bf16[8,8], index: 4, kind: input, shape index: {}]
  %s5 = inlined_call_operand.vmem [shape: f32[2,48,8], index: 5, kind: output, shape index: {0}]
  %s6 = inlined_call_operand.hbm [shape: f32[2,1,8], index: 6, kind: output, shape index: {1}]
  %7 = xla_tuple %s5, %s6
  %s8 = sld [smem:[#allocation0]]
  $region69: #{tpu_custom_call.1} parent=0
    _
  %s10 = ssub.s32 1, %s8
  %s11 = scalar_select 0, %s10, %s8
  $region1: #{tpu_custom_call.1} parent=0
    #allocation3 [shape = 'u8[1024]{0}', space=vmem, size = 0x400, scoped, tag = 'output window, operand 1']
    #allocation4 [shape = 's32[2]{0}', space=sflag, size = 0x8, scoped, tag = 'scoped memory for tpu_custom_call.1']
    %12 = vsyncpa [#allocation4], 0
    %s13 = scalar_lea.sflag [#allocation4], 1
    %14 = vsyncpa %s13, 0
    loop: start=0, step=1, limit=8
    $region2: #{tpu_custom_call.1} parent=1 // loop_pre_header
      _
    $region3: #{tpu_custom_call.1} parent=1 // loop_header
      %s16 = sphi 0, %s20
      %p17 = scmp.ge.s32.totalorder %s16, 8
      %s23 = sphi 0, %s35
      %s24 = sphi 0, %s31
      %s25 = sphi 0, %s23
      %s26 = sphi 0, %s24
      %s27 = sphi 0, %s25
      %s28 = sphi 0, %s26
      %s40 = sphi 0, %s42
      %s43 = sphi 0, %s40
      %s44 = sphi 0, %s43
      %s60 = sphi 0, %s44
      %s64 = sphi 0, %s64
      %s66 = sphi 0, %s64
      %s67 = sphi 0, %s66
      %s81 = sphi 0, %s67
      %s85 = sphi 0, %s85
      %s87 = sphi 0, %s85
      %s88 = sphi 0, %s87
      %s102 = sphi 0, %s88
      %s106 = sphi 0, %s106
      %s108 = sphi 0, %s106
      %s109 = sphi 0, %s108
      %s123 = sphi 0, %s109
      %s127 = sphi 0, %s127
      %s129 = sphi 0, %s127
      %s130 = sphi 0, %s129
      %s144 = sphi 0, %s130
      %s152 = sphi 0, %s154
      %s155 = sphi 0, %s152
      %s156 = sphi 0, %s155
      %s172 = sphi 0, %s156
      %s178 = sphi 0, %s180
      %s181 = sphi 0, %s178
      %s182 = sphi 0, %s181
      %s198 = sphi 0, %s182
    $region4: #{tpu_custom_call.1} parent=1 // loop_header_branch
      %19 = sbr.rel (%p17) target = $region8
    $region5: #{tpu_custom_call.1} parent=1 // loop_body
      %s21 = ssub.s32 %s16, 1
      %s22 = ssub.s32 %s16, 2
      %s29 = sadd.s32 1, %s24
      %p30 = scmp.ge.s32.totalorder %s29, 3
      %s31 = scalar_select %p30, 0, %s29
      %s32 = sadd.s32 1, %s23
      %s33 = scalar_select %p30, %s32, %s23
      %p34 = scmp.ge.s32.totalorder %s33, 2
      %s35 = scalar_select %p34, 0, %s33
      %s36 = ssub.s32 %s23, %s35
      %s37 = ssub.s32 %s24, %s31
      %s38 = sor.u32 %s36, %s37
      %p39 = scmp.eq.s32.totalorder %s38, 0
      %s41 = sadd.s32 %s40, 1
      %s42 = scalar_select %p39, %s40, %s41
      %p45 = pneg %p39
      %p46 = scmp.eq.s32.totalorder %s16, 5
      %p47 = por %p45, %p46
      %p48 = scmp.ne.s32.totalorder %s40, %s43
      %p49 = scmp.eq.s32.totalorder %s16, 0
      %p50 = por %p48, %p49
      %p51 = scmp.ne.s32.totalorder %s40, %s43
      %p52 = scmp.eq.s32.totalorder %s21, 5
      %p53 = por %p51, %p52
      %p54 = scmp.ne.s32.totalorder %s43, %s44
      %p55 = scmp.eq.s32.totalorder %s21, 0
      %p56 = por %p54, %p55
      %p57 = scmp.ne.s32.totalorder %s43, %s44
      %p58 = scmp.eq.s32.totalorder %s22, 5
      %p59 = por %p57, %p58
      %p61 = scmp.ne.s32.totalorder %s44, %s60
      %p62 = scmp.eq.s32.totalorder %s22, 0
      %p63 = por %p61, %p62
      %s65 = sadd.s32 %s64, 1
      %p68 = scmp.eq.s32.totalorder %s16, 5
      %p69 = scmp.ne.s32.totalorder %s64, %s66
      %p70 = scmp.eq.s32.totalorder %s16, 0
      %p71 = por %p69, %p70
      %p72 = scmp.ne.s32.totalorder %s64, %s66
      %p73 = scmp.eq.s32.totalorder %s21, 5
      %p74 = por %p72, %p73
      %p75 = scmp.ne.s32.totalorder %s66, %s67
      %p76 = scmp.eq.s32.totalorder %s21, 0
      %p77 = por %p75, %p76
      %p78 = scmp.ne.s32.totalorder %s66, %s67
      %p79 = scmp.eq.s32.totalorder %s22, 5
      %p80 = por %p78, %p79
      %p82 = scmp.ne.s32.totalorder %s67, %s81
      %p83 = scmp.eq.s32.totalorder %s22, 0
      %p84 = por %p82, %p83
      %s86 = sadd.s32 %s85, 1
      %p89 = scmp.eq.s32.totalorder %s16, 5
      %p90 = scmp.ne.s32.totalorder %s85, %s87
      %p91 = scmp.eq.s32.totalorder %s16, 0
      %p92 = por %p90, %p91
      %p93 = scmp.ne.s32.totalorder %s85, %s87
      %p94 = scmp.eq.s32.totalorder %s21, 5
      %p95 = por %p93, %p94
      %p96 = scmp.ne.s32.totalorder %s87, %s88
      %p97 = scmp.eq.s32.totalorder %s21, 0
      %p98 = por %p96, %p97
      %p99 = scmp.ne.s32.totalorder %s87, %s88
      %p100 = scmp.eq.s32.totalorder %s22, 5
      %p101 = por %p99, %p100
      %p103 = scmp.ne.s32.totalorder %s88, %s102
      %p104 = scmp.eq.s32.totalorder %s22, 0
      %p105 = por %p103, %p104
      %s107 = sadd.s32 %s106, 1
      %p110 = scmp.eq.s32.totalorder %s16, 5
      %p111 = scmp.ne.s32.totalorder %s106, %s108
      %p112 = scmp.eq.s32.totalorder %s16, 0
      %p113 = por %p111, %p112
      %p114 = scmp.ne.s32.totalorder %s106, %s108
      %p115 = scmp.eq.s32.totalorder %s21, 5
      %p116 = por %p114, %p115
      %p117 = scmp.ne.s32.totalorder %s108, %s109
      %p118 = scmp.eq.s32.totalorder %s21, 0
      %p119 = por %p117, %p118
      %p120 = scmp.ne.s32.totalorder %s108, %s109
      %p121 = scmp.eq.s32.totalorder %s22, 5
      %p122 = por %p120, %p121
      %p124 = scmp.ne.s32.totalorder %s109, %s123
      %p125 = scmp.eq.s32.totalorder %s22, 0
      %p126 = por %p124, %p125
      %s128 = sadd.s32 %s127, 1
      %p131 = scmp.eq.s32.totalorder %s16, 5
      %p132 = scmp.ne.s32.totalorder %s127, %s129
      %p133 = scmp.eq.s32.totalorder %s16, 0
      %p134 = por %p132, %p133
      %p135 = scmp.ne.s32.totalorder %s127, %s129
      %p136 = scmp.eq.s32.totalorder %s21, 5
      %p137 = por %p135, %p136
      %p138 = scmp.ne.s32.totalorder %s129, %s130
      %p139 = scmp.eq.s32.totalorder %s21, 0
      %p140 = por %p138, %p139
      %p141 = scmp.ne.s32.totalorder %s129, %s130
      %p142 = scmp.eq.s32.totalorder %s22, 5
      %p143 = por %p141, %p142
      %p145 = scmp.ne.s32.totalorder %s130, %s144
      %p146 = scmp.eq.s32.totalorder %s22, 0
      %p147 = por %p145, %p146
      %s148 = ssub.s32 %s23, %s35
      %s149 = ssub.s32 %s24, %s31
      %s150 = sor.u32 %s148, %s149
      %p151 = scmp.eq.s32.totalorder %s150, 0
      %s153 = sadd.s32 %s152, 1
      %s154 = scalar_select %p151, %s152, %s153
      %p157 = pneg %p151
      %p158 = scmp.eq.s32.totalorder %s16, 5
      %p159 = por %p157, %p158
      %p160 = scmp.ne.s32.totalorder %s152, %s155
      %p161 = scmp.eq.s32.totalorder %s16, 0
      %p162 = por %p160, %p161
      %p163 = scmp.ne.s32.totalorder %s152, %s155
      %p164 = scmp.eq.s32.totalorder %s21, 5
      %p165 = por %p163, %p164
      %p166 = scmp.ne.s32.totalorder %s155, %s156
      %p167 = scmp.eq.s32.totalorder %s21, 0
      %p168 = por %p166, %p167
      %p169 = scmp.ne.s32.totalorder %s155, %s156
      %p170 = scmp.eq.s32.totalorder %s22, 5
      %p171 = por %p169, %p170
      %p173 = scmp.ne.s32.totalorder %s156, %s172
      %p174 = scmp.eq.s32.totalorder %s22, 0
      %p175 = por %p173, %p174
      %s176 = ssub.s32 %s23, %s35
      %p177 = scmp.eq.s32.totalorder %s176, 0
      %s179 = sadd.s32 %s178, 1
      %s180 = scalar_select %p177, %s178, %s179
      %p183 = pneg %p177
      %p184 = scmp.eq.s32.totalorder %s16, 5
      %p185 = por %p183, %p184
      %p186 = scmp.ne.s32.totalorder %s178, %s181
      %p187 = scmp.eq.s32.totalorder %s16, 0
      %p188 = por %p186, %p187
      %p189 = scmp.ne.s32.totalorder %s178, %s181
      %p190 = scmp.eq.s32.totalorder %s21, 5
      %p191 = por %p189, %p190
      %p192 = scmp.ne.s32.totalorder %s181, %s182
      %p193 = scmp.eq.s32.totalorder %s21, 0
      %p194 = por %p192, %p193
      %p195 = scmp.ne.s32.totalorder %s181, %s182
      %p196 = scmp.eq.s32.totalorder %s22, 5
      %p197 = por %p195, %p196
      %p199 = scmp.ne.s32.totalorder %s182, %s198
      %p200 = scmp.eq.s32.totalorder %s22, 0
      %p201 = por %p199, %p200
      %p202 = scmp.le.s32.totalorder 1, %s16
      %p203 = scmp.lt.s32.totalorder %s16, 7
      %p204 = pnand %p202, %p203
      %p205 = pneg %p204
      // Predicated region
      $region9: #{tpu_custom_call.1} parent=5 // pred_check
        _
      $region10: #{tpu_custom_call.1} parent=5 // pred_check_branch
        %207 = sbr.rel (%p204) target = $region12
      $region11: #{tpu_custom_call.1} parent=5 // pred_region
        %s208 = ssub.s32 %s16, 1
        // Predicated region
        $region13: #{tpu_custom_call.1} parent=11 // pred_check
          %p209 = pneg %p77
        $region14: #{tpu_custom_call.1} parent=11 // pred_check_branch
          %211 = sbr.rel (%p209) target = $region16
        $region15: #{tpu_custom_call.1} parent=11 // pred_region
          _
        $region16: #{tpu_custom_call.1} parent=11 // pred_fallthru
          _
        // Predicated region
        $region17: #{tpu_custom_call.1} parent=11 // pred_check
          %p212 = pneg %p98
        $region18: #{tpu_custom_call.1} parent=11 // pred_check_branch
          %214 = sbr.rel (%p212) target = $region20
        $region19: #{tpu_custom_call.1} parent=11 // pred_region
          _
        $region20: #{tpu_custom_call.1} parent=11 // pred_fallthru
          _
        // Predicated region
        $region21: #{tpu_custom_call.1} parent=11 // pred_check
          %p215 = pneg %p119
        $region22: #{tpu_custom_call.1} parent=11 // pred_check_branch
          %217 = sbr.rel (%p215) target = $region24
        $region23: #{tpu_custom_call.1} parent=11 // pred_region
          _
        $region24: #{tpu_custom_call.1} parent=11 // pred_fallthru
          _
        // Predicated region
        $region25: #{tpu_custom_call.1} parent=11 // pred_check
          %p218 = pneg %p140
        $region26: #{tpu_custom_call.1} parent=11 // pred_check_branch
          %220 = sbr.rel (%p218) target = $region28
        $region27: #{tpu_custom_call.1} parent=11 // pred_region
          _
        $region28: #{tpu_custom_call.1} parent=11 // pred_fallthru
          _
      $region12: #{tpu_custom_call.1} parent=5 // pred_fallthru
        _
      %p221 = scmp.lt.s32.totalorder %s16, 6
      // Predicated region
      $region29: #{tpu_custom_call.1} parent=5 // pred_check
        %p222 = pneg %p221
      $region30: #{tpu_custom_call.1} parent=5 // pred_check_branch
        %224 = sbr.rel (%p222) target = $region32
      $region31: #{tpu_custom_call.1} parent=5 // pred_region
        // Predicated region
        $region33: #{tpu_custom_call.1} parent=31 // pred_check
          %p225 = pneg %p50
        $region34: #{tpu_custom_call.1} parent=31 // pred_check_branch
          %227 = sbr.rel (%p225) target = $region36
        $region35: #{tpu_custom_call.1} parent=31 // pred_region
          %s228 = smul.u32 2, %s24
          %s229 = ssub.s32 5, %s228
          %p230 = scmp.lt.s32.totalorder %s229, 2
          %s231 = scalar_select %p230, %s229, 2
          %s232 = smul.u32 8, %s231
          %p233 = scmp.lt.s32.totalorder %s23, 1
          %s234 = scalar_select %p233, %s23, 1
          %p235 = scmp.lt.s32.totalorder %s228, 4
          %s236 = scalar_select %p235, %s228, 4
          %s237 = smul.addr %s234, 5
          %s238 = sadd.s32 %s236, %s237
          %s239 = smul.addr %s238, 8
          %s240 = scalar_lea.vmem %s0, %s239
          %s241 = smul.u32 2, %s24
          %s242 = ssub.s32 5, %s241
          %p243 = scmp.lt.s32.totalorder %s242, 2
          %s244 = scalar_select %p243, %s242, 2
          %s245 = smul.u32 8, %s244
        $region36: #{tpu_custom_call.1} parent=31 // pred_fallthru
          _
      $region32: #{tpu_custom_call.1} parent=5 // pred_fallthru
        _
      %p246 = scmp.le.s32.totalorder 1, %s16
      %p247 = scmp.lt.s32.totalorder %s16, 7
      %p248 = pnand %p246, %p247
      %p249 = pneg %p248
      // Predicated region
      $region37: #{tpu_custom_call.1} parent=5 // pred_check
        _
      $region38: #{tpu_custom_call.1} parent=5 // pred_check_branch
        %251 = sbr.rel (%p248) target = $region40
      $region39: #{tpu_custom_call.1} parent=5 // pred_region
        %s252 = ssub.s32 %s16, 1
        %s253 = smul.u32 2, %s26
        %s254 = ssub.s32 5, %s253
        %p255 = scmp.lt.s32.totalorder %s254, 2
        %s256 = scalar_select %p255, %s254, 2
        %s257 = smul.u32 8, %s256
        %p258 = scmp.lt.s32.totalorder %s25, 1
        %s259 = scalar_select %p258, %s25, 1
        %p260 = scmp.lt.s32.totalorder %s253, 4
        %s261 = scalar_select %p260, %s253, 4
        %s262 = smul.addr %s259, 5
        %s263 = sadd.s32 %s261, %s262
        %s264 = smul.addr %s263, 8
        %s265 = scalar_lea.vmem %s0, %s264
        %p266 = pneg %p56
        %p267 = pneg %p53
        %p268 = pneg %p77
        %p269 = pneg %p74
        %p270 = pneg %p98
        %p271 = pneg %p95
        %p272 = pneg %p119
        %p273 = pneg %p116
        %p274 = pneg %p140
        %p275 = pneg %p137
        %p276 = pneg %p168
        %p277 = pneg %p165
        %s278 = smul.u32 2, %s26
        %p279 = scmp.lt.s32.totalorder %s25, 1
        %s280 = scalar_select %p279, %s25, 1
        %p281 = scmp.lt.s32.totalorder %s278, 5
        %s282 = scalar_select %p281, %s278, 5
        %s283 = smul.addr %s280, 6
        %s284 = sadd.s32 %s282, %s283
        %s285 = smul.addr %s284, 8
        %s286 = scalar_lea.vmem %s5, %s285
        %p287 = pneg %p194
        %p288 = pneg %p191
        %s289 = sand.u32 %s181, 1
        %s290 = scalar_lea.sflag [#allocation4], %s289
        %s291 = sand.u32 %s181, 1
        %s292 = scalar_lea.vmem [#allocation3], %s291
        %s293 = smul.u32 2, %s26
        %s294 = ssub.s32 5, %s293
        %p295 = scmp.lt.s32.totalorder %s294, 2
        %s296 = scalar_select %p295, %s294, 2
        %s297 = smul.u32 8, %s296
        %p298 = scmp.lt.s32.totalorder %s25, 1
        %s299 = scalar_select %p298, %s25, 1
        %p300 = scmp.lt.s32.totalorder %s293, 4
        %s301 = scalar_select %p300, %s293, 4
        %s302 = smul.addr %s299, 5
        %s303 = sadd.s32 %s301, %s302
        %s304 = smul.addr %s303, 8
        %s305 = scalar_lea.vmem %s0, %s304
        %s306 = smul.u32 2, %s26
        %s307 = ssub.s32 5, %s306
        %p308 = scmp.lt.s32.totalorder %s307, 2
        %s309 = scalar_select %p308, %s307, 2
        %s310 = smul.u32 8, %s309
        %s311 = smul.u32 2, %s26
        %p312 = scmp.lt.s32.totalorder %s25, 1
        %s313 = scalar_select %p312, %s25, 1
        %p314 = scmp.lt.s32.totalorder %s311, 5
        %s315 = scalar_select %p314, %s311, 5
        %s316 = smul.addr %s313, 6
        %s317 = sadd.s32 %s315, %s316
        %s318 = smul.addr %s317, 8
        %s319 = scalar_lea.vmem %s5, %s318
        %s320 = smul.u32 2, %s26
        %p322 = scmp.eq.s32.totalorder %s26, 0
        // Predicated region
        $region41: #{tpu_custom_call.1} parent=39 // pred_check
          %p323 = pneg %p322
        $region42: #{tpu_custom_call.1} parent=39 // pred_check_branch
          %325 = sbr.rel (%p323) target = $region44
        $region43: #{tpu_custom_call.1} parent=39 // pred_region
          %vm326 = vcmask 57344
          %327 = vst.msk [vmem:[#allocation2] sm:$0x1] %vm326, 0.0
        $region44: #{tpu_custom_call.1} parent=39 // pred_fallthru
          _
        %v328 = vld [vmem:[%s305] sm:$0xff]
        %v329 = vld [vmem:[%s305 + $0x8] sm:$0xff]
        %v330 = vpack.c.bf16 %v329, %v328
        %v331 = vld [vmem:[%s1] sm:$0xf]
        %v332 = vld [vmem:[%s1 + $0x4] sm:$0xf]
        %v333 = vld [vmem:[%s1 + $0x8] sm:$0xf]
        %v334 = vld [vmem:[%s1 + $0xc] sm:$0xf]
        %v335 = vld [vmem:[%s2] sm:$0x1]
        %v337 = vperm.slane %v335, 0
        %v343 = vunpack.c.l.b16 %v331
        %v344 = vunpack.c.l.b16 %v332
        %v345 = vunpack.c.l.b16 %v333
        %v346 = vunpack.c.l.b16 %v334
        %v347 = vpack.c.b16 %v344, %v343
        %v348 = vpack.c.b16 %v346, %v345
        %vm351 = vcmask 261120
        %v353 = vsel %vm351, %v330, 0
        %355 = vmatpush.bf16.msra.mxu0 0
        %356 = vmatpush.bf16.msra.mxu0 0
        %357 = vmatpush.bf16.msra.mxu0 0
        %358 = vmatpush.bf16.msra.mxu0 0
        %359 = vmatpush.bf16.msra.mxu0 0
        %360 = vmatpush.bf16.msra.mxu0 0
        %361 = vmatpush.bf16.msra.mxu0 %v348
        %362 = vmatpush.bf16.msra.mxu0 %v347
        %363 = vmatmul.bf16.gmra.mxu0 %v353
        %v364 = vpop.f32.mrf.mxu0
        %v365 = vadd.f32 %v337, %v364
        %v366 = vpop.f32.mrf.mxu0
        %v367 = vadd.f32 %v337, %v366
        %368 = vdwg.mxu0
        %v369 = vand.u32 2147483647, %v365
        %v370 = vand.u32 2147483647, %v367
        %v371 = vmul.f32 %v369, 1.442695
        %v372 = vpow.pop %v371
        %v373 = vmul.f32 %v370, 1.442695
        %v374 = vpow.pop %v373
        %v375 = vsub.f32 %v372, 1.0
        %v376 = vsub.f32 %v374, 1.0
        %vm377 = vcmp.ge.f32.partialorder %v365, 0.0
        %vm378 = vcmp.ge.f32.partialorder %v367, 0.0
        %v379 = vsub.f32 0.0, %v375
        %v380 = vsub.f32 0.0, %v376
        %v381 = vsel %vm377, %v375, %v379
        %v382 = vsel %vm378, %v376, %v380
        %v383 = vmax.f32 %v381, -100.0
        %v384 = vmax.f32 %v382, -100.0
        %v385 = vmin.f32 %v383, 100.0
        %v386 = vmin.f32 %v384, 100.0
        %v387 = vrot.slane %v385, 7
        %v388 = vrot.slane %v386, 7
        %v389 = vlaneseq
        %v390 = vshrl.u32 %v389, 7
        %vm391 = vcmp.lt.s32.totalorder %v390, 1
        %v392 = vsel %vm391, %v387, %v388
        %v393 = vsel %vm391, %v388, %v387
        %v394 = vadd.s32 %v390, 8
        %vm395 = vcmp.eq.s32.totalorder %v390, 0
        %vm396 = vcmp.eq.s32.totalorder %v394, 0
        %v397 = vld [vmem:[#allocation2] sm:$0x1]
        %v398 = vsel %vm395, 1, 0
        %v399 = vsel %vm396, 1, 0
        %vm400 = vcmp.eq.s32.totalorder %v398, 1
        %vm401 = vcmp.eq.s32.totalorder %v399, 1
        %v403 = vperm.slane %v397, 0
        %v405 = vsel %vm400, %v403, %v393
        %v406 = vsel %vm401, %v403, %v392
        %vm407 = vcmask 64519
        %408 = vst.msk [vmem:[#allocation2 - $0x7] sm:$0x80] %vm407, %v386
        %v409 = vpack.c.bf16 %v385, %v385
        %v410 = vpack.c.bf16 %v386, %v386
        %v411 = vld [vmem:[%s3] sm:$0xf]
        %v412 = vpack.c.bf16 %v406, %v405
        %v413 = vld [vmem:[%s4] sm:$0xf]
        %vm414 = vcmask 64512
        %v416 = vsel %vm414, %v412, 0
        %vm418 = vcmask 1043456
        %v420 = vsel %vm418, %v413, 0
        %422 = vmatpush.bf16.msra.mxu0 0
        %423 = vmatpush.bf16.msra.mxu0 0
        %424 = vmatpush.bf16.msra.mxu0 0
        %425 = vmatpush.bf16.msra.mxu0 0
        %426 = vmatpush.bf16.msra.mxu0 0
        %427 = vmatpush.bf16.msra.mxu0 0
        %428 = vmatpush.bf16.msra.mxu0 0
        %429 = vmatpush.bf16.msra.mxu0 %v420
        %430 = vmatmul.bf16.gmra.mxu0 %v416
        %v431 = vpop.f32.mrf.mxu0
        %v432 = vadd.f32 0.0, %v431
        %v433 = vpop.f32.mrf.mxu0
        %v434 = vadd.f32 0.0, %v433
        %435 = vdwg.mxu0
        %v438 = vunpack.c.l.b16 %v409
        %v439 = vunpack.c.l.b16 %v410
        %v440 = vpack.c.b16 %v439, %v438
        %v442 = vsel %vm414, %v440, 0
        %v445 = vsel %vm418, %v411, 0
        %447 = vmatpush.bf16.msra.mxu0 0
        %448 = vmatpush.bf16.msra.mxu0 0
        %449 = vmatpush.bf16.msra.mxu0 0
        %450 = vmatpush.bf16.msra.mxu0 0
        %451 = vmatpush.bf16.msra.mxu0 0
        %452 = vmatpush.bf16.msra.mxu0 0
        %453 = vmatpush.bf16.msra.mxu0 0
        %454 = vmatpush.bf16.msra.mxu0 %v445
        %455 = vmatmul.bf16.gmra.mxu0 %v442
        %v456 = vpop.f32.mrf.mxu0
        %v457 = vadd.f32 %v432, %v456
        %v458 = vpop.f32.mrf.mxu0
        %v459 = vadd.f32 %v434, %v458
        %460 = vdwg.mxu0
        %461 = vst.msk [vmem:[%s319] sm:$0xff] %vm414, %v457
        %462 = vst.msk [vmem:[%s319 + $0x8] sm:$0xff] %vm414, %v459
        %p463 = scmp.eq.s32.totalorder %s26, 2
        // Predicated region
        $region45: #{tpu_custom_call.1} parent=39 // pred_check
          %p464 = pneg %p463
        $region46: #{tpu_custom_call.1} parent=39 // pred_check_branch
          %466 = sbr.rel (%p464) target = $region48
        $region47: #{tpu_custom_call.1} parent=39 // pred_region
          %v467 = vld [vmem:[%s4] sm:$0xf]
          %v468 = vpack.c.b16 %v438, %v438
          %v470 = vshrl.u32 %v468, 16
          %v472 = vrot.slane %v470, 3
          %v474 = vsel %vm414, %v472, 0
          %v477 = vsel %vm418, %v467, 0
          %479 = vmatpush.bf16.msra.mxu0 0
          %480 = vmatpush.bf16.msra.mxu0 0
          %481 = vmatpush.bf16.msra.mxu0 0
          %482 = vmatpush.bf16.msra.mxu0 0
          %483 = vmatpush.bf16.msra.mxu0 0
          %484 = vmatpush.bf16.msra.mxu0 0
          %485 = vmatpush.bf16.msra.mxu0 0
          %486 = vmatpush.bf16.msra.mxu0 %v477
          %487 = vmatmul.bf16.gmra.mxu0 %v474
          %v488 = vpop.f32.mrf.mxu0
          %v489 = vadd.f32 0.0, %v488
          %v490 = vpop.f32.mrf.mxu0
          %491 = vdwg.mxu0
          %vm492 = vcmask 57344
          %493 = vst.msk [vmem:[%s292] sm:$0x1] %vm492, %v489
        $region48: #{tpu_custom_call.1} parent=39 // pred_fallthru
          _
        %s494 = smul.u32 2, %s26
        %p495 = scmp.lt.s32.totalorder %s25, 1
        %s496 = scalar_select %p495, %s25, 1
        %p497 = scmp.lt.s32.totalorder %s494, 5
        %s498 = scalar_select %p497, %s494, 5
        %s499 = smul.addr %s496, 6
        %s500 = sadd.s32 %s498, %s499
        %s501 = smul.addr %s500, 8
        %s502 = scalar_lea.vmem %s5, %s501
        %s503 = sand.u32 %s181, 1
        %s504 = scalar_lea.sflag [#allocation4], %s503
        %s505 = sand.u32 %s181, 1
        %s506 = scalar_lea.vmem [#allocation3], %s505
        // Predicated region
        $region49: #{tpu_custom_call.1} parent=39 // pred_check
          %p507 = pneg %p165
        $region50: #{tpu_custom_call.1} parent=39 // pred_check_branch
          %509 = sbr.rel (%p507) target = $region52
        $region51: #{tpu_custom_call.1} parent=39 // pred_region
          %s510 = smul.u32 2, %s26
        $region52: #{tpu_custom_call.1} parent=39 // pred_fallthru
          _
        // Predicated region
        $region53: #{tpu_custom_call.1} parent=39 // pred_check
          %p511 = pneg %p191
        $region54: #{tpu_custom_call.1} parent=39 // pred_check_branch
          %513 = sbr.rel (%p511) target = $region56
        $region55: #{tpu_custom_call.1} parent=39 // pred_region
          %515 = vsyncadd %s504, 0
          %s516 = scalar_lea.hbm %s6, %s25
          %s518 = sshll.u32 %s506, 4
          %s519 = int_to_ptr.vmem [resolvable:$true] %s518
          %s520 = sshll.u32 %s516, 4
          %s521 = int_to_ptr.hbm [resolvable:$true] %s520
          %523 = dma.vmem_to_hbm [thread:$0]  %s519, 16, %s521, %s504
        $region56: #{tpu_custom_call.1} parent=39 // pred_fallthru
          _
      $region40: #{tpu_custom_call.1} parent=5 // pred_fallthru
        _
      %p524 = scmp.le.s32.totalorder 2, %s16
      // Predicated region
      $region57: #{tpu_custom_call.1} parent=5 // pred_check
        %p525 = pneg %p524
      $region58: #{tpu_custom_call.1} parent=5 // pred_check_branch
        %527 = sbr.rel (%p525) target = $region60
      $region59: #{tpu_custom_call.1} parent=5 // pred_region
        %s528 = ssub.s32 %s16, 2
        // Predicated region
        $region61: #{tpu_custom_call.1} parent=59 // pred_check
          %p529 = pneg %p171
        $region62: #{tpu_custom_call.1} parent=59 // pred_check_branch
          %531 = sbr.rel (%p529) target = $region64
        $region63: #{tpu_custom_call.1} parent=59 // pred_region
          %s532 = smul.u32 2, %s28
          %p533 = scmp.lt.s32.totalorder %s27, 1
          %s534 = scalar_select %p533, %s27, 1
          %p535 = scmp.lt.s32.totalorder %s532, 5
          %s536 = scalar_select %p535, %s532, 5
          %s537 = smul.addr %s534, 6
          %s538 = sadd.s32 %s536, %s537
          %s539 = smul.addr %s538, 8
          %s540 = scalar_lea.vmem %s5, %s539
        $region64: #{tpu_custom_call.1} parent=59 // pred_fallthru
          _
        // Predicated region
        $region65: #{tpu_custom_call.1} parent=59 // pred_check
          %p541 = pneg %p197
        $region66: #{tpu_custom_call.1} parent=59 // pred_check_branch
          %543 = sbr.rel (%p541) target = $region68
        $region67: #{tpu_custom_call.1} parent=59 // pred_region
          %s544 = sand.u32 %s182, 1
          %s545 = scalar_lea.sflag [#allocation4], %s544
          %s546 = sand.u32 %s182, 1
          %s547 = scalar_lea.vmem [#allocation3], %s546
          %549 = dma.done %s545, 16
        $region68: #{tpu_custom_call.1} parent=59 // pred_fallthru
          _
      $region60: #{tpu_custom_call.1} parent=5 // pred_fallthru
        _
    $region6: #{tpu_custom_call.1} parent=1 // loop_footer
      %s20 = sadd.s32 1, %s16
    $region7: #{tpu_custom_call.1} parent=1 // loop_footer_branch
      %15 = sbr.rel target = $region3
    $region8: #{tpu_custom_call.1} parent=1 // loop_exit
      _
    %550 = vsyncpa [#allocation4], 1
    %s551 = scalar_lea.sflag [#allocation4], 1
    %552 = vsyncpa %s551, 1

</llo_original>
